<compile_context>
chip_gen: v7x
topology: tpu7x:2x2x1
jax: 0.10.0
libtpu: 0.0.40
codegen_flags: <defaults>
</compile_context>

<pallas_src>
import functools

import jax
import jax.numpy as jnp
from jax.experimental import pallas as pl
from jax.experimental.pallas import tpu as pltpu


# ----------------------------- slab layout -----------------------------------

def _round8(n):
    return ((n + 7) // 8) * 8


def _slab_layout(input_size, hidden_size, embed_dim, output_size):
    """Row offsets of each weight block in the sublane-concatenated slab.

    Every block starts on an 8-sublane boundary so in-kernel static slices are
    tile-aligned (no relayout shuffles at kernel entry).
    """
    off = {}
    r = 0
    off["wih_e"] = r; r += _round8(input_size)
    off["b_e"] = r;   r += 8
    off["whh_e"] = r; r += _round8(hidden_size)
    off["wih_d"] = r; r += _round8(embed_dim)
    off["b_d"] = r;   r += 8
    off["embed"] = r; r += _round8(output_size)
    off["bfc"] = r;   r += 8
    off["_rows"] = r
    return off


# ----------------------------- kernel ----------------------------------------

def _ar_lstm_kernel(x_ref, slab_ref, whdfc_ref, out_ref, *,
                    input_size, hidden_size, output_size, embed_dim,
                    seq_len, batch, future_len, off):
    I, H, O, E = input_size, hidden_size, output_size, embed_dim
    T, B = seq_len, batch
    G = 4 * H

    # ---- static, tile-aligned views into the single weight-slab operand.
    wih_e = slab_ref[off["wih_e"]:off["wih_e"] + I, :]       # (I, 4H)
    b_e = slab_ref[off["b_e"]:off["b_e"] + 1, :]             # (1, 4H)
    whh_e = slab_ref[off["whh_e"]:off["whh_e"] + H, :]       # (H, 4H)
    wih_d = slab_ref[off["wih_d"]:off["wih_d"] + E, :]       # (E, 4H)
    b_d = slab_ref[off["b_d"]:off["b_d"] + 1, :]             # (1, 4H)
    embed = slab_ref[off["embed"]:off["embed"] + O, 0:E]     # (O, E)
    bfc = slab_ref[off["bfc"]:off["bfc"] + 1, 0:O]           # (1, O)
    whdfc = whdfc_ref[...]                                   # (H, 4H + O) = [Whh_d | Wfc]

    # ---- one-shot projections at kernel entry (off the serial chain):
    # encoder input projection for all T steps (rows ordered t*B + b), and the
    # decoder token table (embedding folded into decoder input weights + bias).
    xw = jnp.dot(x_ref[...], wih_e, preferred_element_type=jnp.float32) + b_e   # (T*B, 4H)
    table = jnp.dot(embed, wih_d, preferred_element_type=jnp.float32) + b_d     # (O, 4H)

    def lstm_gates(gates, c):
        # i/f/o gate columns were pre-scaled by 0.5 in the wrapper, so a SINGLE
        # tanh push serves both the sigmoid gates (0.5*tanh(x/2)+0.5) and g.
        t = jnp.tanh(gates)
        s = 0.5 * t + 0.5
        i = s[:, 0 * H:1 * H]
        f = s[:, 1 * H:2 * H]
        g = t[:, 2 * H:3 * H]
        o = s[:, 3 * H:4 * H]
        c_new = f * c + i * g
        h_new = o * jnp.tanh(c_new)
        return h_new, c_new

    h = jnp.zeros((B, H), jnp.float32)
    c = jnp.zeros((B, H), jnp.float32)

    # ---- encoder: only h @ Whh_e stays on the per-step serial chain.
    for t in range(T):                                       # static -> unrolled
        gates = xw[t * B:(t + 1) * B, :] + jnp.dot(
            h, whh_e, preferred_element_type=jnp.float32)
        h, c = lstm_gates(gates, c)

    # ---- decoder: greedy autoregressive rollout.
    iota = jax.lax.broadcasted_iota(jnp.int32, (B, O), 1)
    r = jnp.dot(h, whdfc, preferred_element_type=jnp.float32)[:, :G]
    emb = table[0:1, :]                                      # token 0 feedback (y_prev = 0)
    for s in range(future_len):                              # static -> unrolled
        h, c = lstm_gates(emb + r, c)
        z = jnp.dot(h, whdfc, preferred_element_type=jnp.float32)   # (B, 4H + O)
        r = z[:, :G]                                         # next-step recurrent gates
        logits = z[:, G:G + O] + bfc
        out_ref[:, s * O:(s + 1) * O] = logits               # off-critical-path store
        if s + 1 < future_len:
            # First-maximal-index argmax (torch.argmax semantics) -> one-hot.
            # Kept as max + min-of-where: exact tie-break; Mosaic has no fused
            # indexed reduce, and both reduces are only 16 live lanes.
            max_v = jnp.max(logits, axis=-1, keepdims=True)
            idx = jnp.min(jnp.where(logits == max_v, iota, O),
                          axis=-1, keepdims=True)            # (B, 1) int32
            onehot = (iota == idx).astype(jnp.float32)
            emb = jnp.dot(onehot, table, preferred_element_type=jnp.float32)


# ----------------------------- wrapper ----------------------------------------

def autoregressive_lstm(x_hist, params, future_len):
    B, T, I = x_hist.shape
    H = params["whh_e"].shape[0]
    O, E = params["embed"].shape
    G = 4 * H
    f32 = jnp.float32

    # Fold the sigmoid's argument halving into the i/f/o gate columns so the
    # kernel's gate nonlinearity is a single tanh push (g column untouched).
    gate_scale = jnp.concatenate(
        [jnp.full((H,), 0.5, f32), jnp.full((H,), 0.5, f32),
         jnp.ones((H,), f32), jnp.full((H,), 0.5, f32)])

    def scaled(name):
        return params[name].astype(f32) * gate_scale

    off = _slab_layout(I, H, E, O)
    slab = jnp.zeros((off["_rows"], G), f32)
    slab = slab.at[off["wih_e"]:off["wih_e"] + I, :].set(scaled("wih_e"))
    slab = slab.at[off["b_e"]:off["b_e"] + 1, :].set(scaled("b_e"))
    slab = slab.at[off["whh_e"]:off["whh_e"] + H, :].set(scaled("whh_e"))
    slab = slab.at[off["wih_d"]:off["wih_d"] + E, :].set(scaled("wih_d"))
    slab = slab.at[off["b_d"]:off["b_d"] + 1, :].set(scaled("b_d"))
    slab = slab.at[off["embed"]:off["embed"] + O, 0:E].set(params["embed"].astype(f32))
    slab = slab.at[off["bfc"]:off["bfc"] + 1, 0:O].set(params["bfc"].astype(f32))

    # FC head folded into the decoder recurrent weights: (H, 4H + O).
    whdfc = jnp.concatenate([scaled("whh_d"), params["wfc"].astype(f32)], axis=1)

    # Lane-dense 2-D encoder input, rows ordered t*B + b (time-major) so the
    # kernel reads contiguous static sublane slices per step.
    x2 = jnp.transpose(x_hist.astype(f32), (1, 0, 2)).reshape(T * B, I)

    kernel = functools.partial(
        _ar_lstm_kernel, input_size=I, hidden_size=H, output_size=O,
        embed_dim=E, seq_len=T, batch=B, future_len=future_len, off=off)
    vmem = pl.BlockSpec(memory_space=pltpu.MemorySpace.VMEM)

    out = pl.pallas_call(
        kernel,
        out_shape=jax.ShapeDtypeStruct((B, future_len * O), f32),
        in_specs=[vmem, vmem, vmem],
        out_specs=vmem,
    )(x2, slab, whdfc)

    out = out.reshape(B, future_len, O)
    # torch: torch.stack(preds, dim=1).squeeze(0)
    return out[0] if B == 1 else out


# ----------------------------- pure-JAX reference -----------------------------

def _lstm_step_ref(x_t, h, c, w_ih, w_hh, b, H):
    gates = jnp.dot(x_t, w_ih) + jnp.dot(h, w_hh) + b
    i = jax.nn.sigmoid(gates[:, 0 * H:1 * H])
    f = jax.nn.sigmoid(gates[:, 1 * H:2 * H])
    g = jnp.tanh(gates[:, 2 * H:3 * H])
    o = jax.nn.sigmoid(gates[:, 3 * H:4 * H])
    c_new = f * c + i * g
    h_new = o * jnp.tanh(c_new)
    return h_new, c_new


def _reference(x_hist, params, future_len):
    B, T, _ = x_hist.shape
    H = params["whh_e"].shape[0]
    h = jnp.zeros((B, H), jnp.float32)
    c = jnp.zeros((B, H), jnp.float32)
    for t in range(T):
        h, c = _lstm_step_ref(x_hist[:, t, :], h, c,
                              params["wih_e"], params["whh_e"], params["b_e"], H)
    y_prev = jnp.zeros((B,), jnp.int32)
    preds = []
    for _ in range(future_len):
        inp = params["embed"][y_prev]
        h, c = _lstm_step_ref(inp, h, c,
                              params["wih_d"], params["whh_d"], params["b_d"], H)
        logits = jnp.dot(h, params["wfc"]) + params["bfc"]
        preds.append(logits)
        y_prev = jnp.argmax(logits, axis=-1).astype(jnp.int32)
    out = jnp.stack(preds, axis=1)
    return out[0] if B == 1 else out


# ----------------------------- setup / main ------------------------------------

def init_params(key, input_size, hidden_size, output_size, embed_dim):
    H = hidden_size
    k = 1.0 / jnp.sqrt(jnp.float32(H))
    keys = jax.random.split(key, 12)

    def u(kk, shape):
        return jax.random.uniform(kk, shape, jnp.float32, -k, k)

    # LSTM biases in torch are b_ih + b_hh -> fold into a single (1, 4H) bias.
    params = {
        "wih_e": u(keys[0], (input_size, 4 * H)),
        "whh_e": u(keys[1], (H, 4 * H)),
        "b_e":   u(keys[2], (1, 4 * H)) + u(keys[3], (1, 4 * H)),
        "embed": jax.random.normal(keys[4], (output_size, embed_dim), jnp.float32),
        "wih_d": u(keys[5], (embed_dim, 4 * H)),
        "whh_d": u(keys[6], (H, 4 * H)),
        "b_d":   u(keys[7], (1, 4 * H)) + u(keys[8], (1, 4 * H)),
        "wfc":   u(keys[9], (H, output_size)),
        "bfc":   u(keys[10], (1, output_size)),
    }
    return params


if __name__ == "__main__":
    B, T, INPUT_SIZE = 2, 8, 4
    HIDDEN, OUTPUT_SIZE, EMBED_DIM = 32, 16, 8
    FUTURE_LEN = 6

    key = jax.random.PRNGKey(0)
    k_param, k_x = jax.random.split(key)
    params = init_params(k_param, INPUT_SIZE, HIDDEN, OUTPUT_SIZE, EMBED_DIM)
    x_hist = jax.random.normal(k_x, (B, T, INPUT_SIZE), jnp.float32)

    # Jit the whole wrapper so weight prep + kernel are a single device program
    # (one dispatch; this was the largest end-to-end latency item in review).
    run = jax.jit(autoregressive_lstm, static_argnames=("future_len",))
    out = jax.block_until_ready(run(x_hist, params, future_len=FUTURE_LEN))

    ref = jax.block_until_ready(_reference(x_hist, params, FUTURE_LEN))
    assert out.shape == (B, FUTURE_LEN, OUTPUT_SIZE), out.shape
    assert jnp.allclose(out, ref, rtol=1e-4, atol=1e-4), "mismatch vs reference"

    print("KERNEL_OK")
</pallas_src>

<mosaic_0001>
module attributes {stable_mosaic.version = 11 : i64} {
  func.func @_ar_lstm_kernel(%arg0: memref<16x4xf32, #tpu.memory_space<vmem>>, %arg1: memref<88x128xf32, #tpu.memory_space<vmem>>, %arg2: memref<32x144xf32, #tpu.memory_space<vmem>>, %arg3: memref<2x96xf32, #tpu.memory_space<vmem>>) attributes {dimension_semantics = [], scalar_prefetch = 0 : i64, scratch_operands = 0 : i64, tpu.core_type = #tpu.core_type<tc>} {
    %c0 = arith.constant 0 : index
    %c0_0 = arith.constant 0 : index
    %0 = vector.load %arg1[%c0, %c0_0] : memref<88x128xf32, #tpu.memory_space<vmem>>, vector<4x128xf32>
    %c8 = arith.constant 8 : index
    %c0_1 = arith.constant 0 : index
    %1 = vector.load %arg1[%c8, %c0_1] : memref<88x128xf32, #tpu.memory_space<vmem>>, vector<1x128xf32>
    %c16 = arith.constant 16 : index
    %c0_2 = arith.constant 0 : index
    %2 = vector.load %arg1[%c16, %c0_2] : memref<88x128xf32, #tpu.memory_space<vmem>>, vector<32x128xf32>
    %c48 = arith.constant 48 : index
    %c0_3 = arith.constant 0 : index
    %3 = vector.load %arg1[%c48, %c0_3] : memref<88x128xf32, #tpu.memory_space<vmem>>, vector<8x128xf32>
    %c56 = arith.constant 56 : index
    %c0_4 = arith.constant 0 : index
    %4 = vector.load %arg1[%c56, %c0_4] : memref<88x128xf32, #tpu.memory_space<vmem>>, vector<1x128xf32>
    %c64 = arith.constant 64 : index
    %c0_5 = arith.constant 0 : index
    %5 = vector.load %arg1[%c64, %c0_5] : memref<88x128xf32, #tpu.memory_space<vmem>>, vector<16x8xf32>
    %c80 = arith.constant 80 : index
    %c0_6 = arith.constant 0 : index
    %6 = vector.load %arg1[%c80, %c0_6] : memref<88x128xf32, #tpu.memory_space<vmem>>, vector<1x16xf32>
    %c0_7 = arith.constant 0 : index
    %c0_8 = arith.constant 0 : index
    %7 = vector.load %arg2[%c0_7, %c0_8] : memref<32x144xf32, #tpu.memory_space<vmem>>, vector<32x144xf32>
    %c0_9 = arith.constant 0 : index
    %c0_10 = arith.constant 0 : index
    %8 = vector.load %arg0[%c0_9, %c0_10] : memref<16x4xf32, #tpu.memory_space<vmem>>, vector<16x4xf32>
    %cst = arith.constant dense<0.000000e+00> : vector<16x128xf32>
    %9 = tpu.matmul %8, %0, %cst {dimension_numbers = #tpu.dot_dimension_numbers<[1], [0], [0], [1], [0, 0, 1, 1], [], []>} : vector<16x4xf32>, vector<4x128xf32>, vector<16x128xf32> -> vector<16x128xf32>
    %10 = vector.broadcast %1 : vector<1x128xf32> to vector<16x128xf32>
    %11 = arith.addf %9, %10 : vector<16x128xf32>
    %cst_11 = arith.constant dense<0.000000e+00> : vector<16x128xf32>
    %12 = tpu.matmul %5, %3, %cst_11 {dimension_numbers = #tpu.dot_dimension_numbers<[1], [0], [0], [1], [0, 0, 1, 1], [], []>} : vector<16x8xf32>, vector<8x128xf32>, vector<16x128xf32> -> vector<16x128xf32>
    %13 = vector.broadcast %4 : vector<1x128xf32> to vector<16x128xf32>
    %14 = arith.addf %12, %13 : vector<16x128xf32>
    %cst_12 = arith.constant 0.000000e+00 : f32
    %15 = vector.broadcast %cst_12 : f32 to vector<2x32xf32>
    %cst_13 = arith.constant 0.000000e+00 : f32
    %16 = vector.broadcast %cst_13 : f32 to vector<2x32xf32>
    %17 = vector.extract_strided_slice %11 {offsets = [0, 0], sizes = [2, 128], strides = [1, 1]} : vector<16x128xf32> to vector<2x128xf32>
    %cst_14 = arith.constant dense<0.000000e+00> : vector<2x128xf32>
    %18 = tpu.matmul %15, %2, %cst_14 {dimension_numbers = #tpu.dot_dimension_numbers<[1], [0], [0], [1], [0, 0, 1, 1], [], []>} : vector<2x32xf32>, vector<32x128xf32>, vector<2x128xf32> -> vector<2x128xf32>
    %19 = arith.addf %17, %18 : vector<2x128xf32>
    %20 = math.tanh %19 : vector<2x128xf32>
    %cst_15 = arith.constant 5.000000e-01 : f32
    %21 = vector.broadcast %cst_15 : f32 to vector<2x128xf32>
    %22 = arith.mulf %21, %20 : vector<2x128xf32>
    %cst_16 = arith.constant 5.000000e-01 : f32
    %23 = vector.broadcast %cst_16 : f32 to vector<2x128xf32>
    %24 = arith.addf %22, %23 : vector<2x128xf32>
    %25 = vector.extract_strided_slice %24 {offsets = [0, 0], sizes = [2, 32], strides = [1, 1]} : vector<2x128xf32> to vector<2x32xf32>
    %26 = vector.extract_strided_slice %24 {offsets = [0, 32], sizes = [2, 32], strides = [1, 1]} : vector<2x128xf32> to vector<2x32xf32>
    %27 = vector.extract_strided_slice %20 {offsets = [0, 64], sizes = [2, 32], strides = [1, 1]} : vector<2x128xf32> to vector<2x32xf32>
    %28 = vector.extract_strided_slice %24 {offsets = [0, 96], sizes = [2, 32], strides = [1, 1]} : vector<2x128xf32> to vector<2x32xf32>
    %29 = arith.mulf %26, %16 : vector<2x32xf32>
    %30 = arith.mulf %25, %27 : vector<2x32xf32>
    %31 = arith.addf %29, %30 : vector<2x32xf32>
    %32 = math.tanh %31 : vector<2x32xf32>
    %33 = arith.mulf %28, %32 : vector<2x32xf32>
    %34 = vector.extract_strided_slice %11 {offsets = [2, 0], sizes = [2, 128], strides = [1, 1]} : vector<16x128xf32> to vector<2x128xf32>
    %cst_17 = arith.constant dense<0.000000e+00> : vector<2x128xf32>
    %35 = tpu.matmul %33, %2, %cst_17 {dimension_numbers = #tpu.dot_dimension_numbers<[1], [0], [0], [1], [0, 0, 1, 1], [], []>} : vector<2x32xf32>, vector<32x128xf32>, vector<2x128xf32> -> vector<2x128xf32>
    %36 = arith.addf %34, %35 : vector<2x128xf32>
    %37 = math.tanh %36 : vector<2x128xf32>
    %cst_18 = arith.constant 5.000000e-01 : f32
    %38 = vector.broadcast %cst_18 : f32 to vector<2x128xf32>
    %39 = arith.mulf %38, %37 : vector<2x128xf32>
    %cst_19 = arith.constant 5.000000e-01 : f32
    %40 = vector.broadcast %cst_19 : f32 to vector<2x128xf32>
    %41 = arith.addf %39, %40 : vector<2x128xf32>
    %42 = vector.extract_strided_slice %41 {offsets = [0, 0], sizes = [2, 32], strides = [1, 1]} : vector<2x128xf32> to vector<2x32xf32>
    %43 = vector.extract_strided_slice %41 {offsets = [0, 32], sizes = [2, 32], strides = [1, 1]} : vector<2x128xf32> to vector<2x32xf32>
    %44 = vector.extract_strided_slice %37 {offsets = [0, 64], sizes = [2, 32], strides = [1, 1]} : vector<2x128xf32> to vector<2x32xf32>
    %45 = vector.extract_strided_slice %41 {offsets = [0, 96], sizes = [2, 32], strides = [1, 1]} : vector<2x128xf32> to vector<2x32xf32>
    %46 = arith.mulf %43, %31 : vector<2x32xf32>
    %47 = arith.mulf %42, %44 : vector<2x32xf32>
    %48 = arith.addf %46, %47 : vector<2x32xf32>
    %49 = math.tanh %48 : vector<2x32xf32>
    %50 = arith.mulf %45, %49 : vector<2x32xf32>
    %51 = vector.extract_strided_slice %11 {offsets = [4, 0], sizes = [2, 128], strides = [1, 1]} : vector<16x128xf32> to vector<2x128xf32>
    %cst_20 = arith.constant dense<0.000000e+00> : vector<2x128xf32>
    %52 = tpu.matmul %50, %2, %cst_20 {dimension_numbers = #tpu.dot_dimension_numbers<[1], [0], [0], [1], [0, 0, 1, 1], [], []>} : vector<2x32xf32>, vector<32x128xf32>, vector<2x128xf32> -> vector<2x128xf32>
    %53 = arith.addf %51, %52 : vector<2x128xf32>
    %54 = math.tanh %53 : vector<2x128xf32>
    %cst_21 = arith.constant 5.000000e-01 : f32
    %55 = vector.broadcast %cst_21 : f32 to vector<2x128xf32>
    %56 = arith.mulf %55, %54 : vector<2x128xf32>
    %cst_22 = arith.constant 5.000000e-01 : f32
    %57 = vector.broadcast %cst_22 : f32 to vector<2x128xf32>
    %58 = arith.addf %56, %57 : vector<2x128xf32>
    %59 = vector.extract_strided_slice %58 {offsets = [0, 0], sizes = [2, 32], strides = [1, 1]} : vector<2x128xf32> to vector<2x32xf32>
    %60 = vector.extract_strided_slice %58 {offsets = [0, 32], sizes = [2, 32], strides = [1, 1]} : vector<2x128xf32> to vector<2x32xf32>
    %61 = vector.extract_strided_slice %54 {offsets = [0, 64], sizes = [2, 32], strides = [1, 1]} : vector<2x128xf32> to vector<2x32xf32>
    %62 = vector.extract_strided_slice %58 {offsets = [0, 96], sizes = [2, 32], strides = [1, 1]} : vector<2x128xf32> to vector<2x32xf32>
    %63 = arith.mulf %60, %48 : vector<2x32xf32>
    %64 = arith.mulf %59, %61 : vector<2x32xf32>
    %65 = arith.addf %63, %64 : vector<2x32xf32>
    %66 = math.tanh %65 : vector<2x32xf32>
    %67 = arith.mulf %62, %66 : vector<2x32xf32>
    %68 = vector.extract_strided_slice %11 {offsets = [6, 0], sizes = [2, 128], strides = [1, 1]} : vector<16x128xf32> to vector<2x128xf32>
    %cst_23 = arith.constant dense<0.000000e+00> : vector<2x128xf32>
    %69 = tpu.matmul %67, %2, %cst_23 {dimension_numbers = #tpu.dot_dimension_numbers<[1], [0], [0], [1], [0, 0, 1, 1], [], []>} : vector<2x32xf32>, vector<32x128xf32>, vector<2x128xf32> -> vector<2x128xf32>
    %70 = arith.addf %68, %69 : vector<2x128xf32>
    %71 = math.tanh %70 : vector<2x128xf32>
    %cst_24 = arith.constant 5.000000e-01 : f32
    %72 = vector.broadcast %cst_24 : f32 to vector<2x128xf32>
    %73 = arith.mulf %72, %71 : vector<2x128xf32>
    %cst_25 = arith.constant 5.000000e-01 : f32
    %74 = vector.broadcast %cst_25 : f32 to vector<2x128xf32>
    %75 = arith.addf %73, %74 : vector<2x128xf32>
    %76 = vector.extract_strided_slice %75 {offsets = [0, 0], sizes = [2, 32], strides = [1, 1]} : vector<2x128xf32> to vector<2x32xf32>
    %77 = vector.extract_strided_slice %75 {offsets = [0, 32], sizes = [2, 32], strides = [1, 1]} : vector<2x128xf32> to vector<2x32xf32>
    %78 = vector.extract_strided_slice %71 {offsets = [0, 64], sizes = [2, 32], strides = [1, 1]} : vector<2x128xf32> to vector<2x32xf32>
    %79 = vector.extract_strided_slice %75 {offsets = [0, 96], sizes = [2, 32], strides = [1, 1]} : vector<2x128xf32> to vector<2x32xf32>
    %80 = arith.mulf %77, %65 : vector<2x32xf32>
    %81 = arith.mulf %76, %78 : vector<2x32xf32>
    %82 = arith.addf %80, %81 : vector<2x32xf32>
    %83 = math.tanh %82 : vector<2x32xf32>
    %84 = arith.mulf %79, %83 : vector<2x32xf32>
    %85 = vector.extract_strided_slice %11 {offsets = [8, 0], sizes = [2, 128], strides = [1, 1]} : vector<16x128xf32> to vector<2x128xf32>
    %cst_26 = arith.constant dense<0.000000e+00> : vector<2x128xf32>
    %86 = tpu.matmul %84, %2, %cst_26 {dimension_numbers = #tpu.dot_dimension_numbers<[1], [0], [0], [1], [0, 0, 1, 1], [], []>} : vector<2x32xf32>, vector<32x128xf32>, vector<2x128xf32> -> vector<2x128xf32>
    %87 = arith.addf %85, %86 : vector<2x128xf32>
    %88 = math.tanh %87 : vector<2x128xf32>
    %cst_27 = arith.constant 5.000000e-01 : f32
    %89 = vector.broadcast %cst_27 : f32 to vector<2x128xf32>
    %90 = arith.mulf %89, %88 : vector<2x128xf32>
    %cst_28 = arith.constant 5.000000e-01 : f32
    %91 = vector.broadcast %cst_28 : f32 to vector<2x128xf32>
    %92 = arith.addf %90, %91 : vector<2x128xf32>
    %93 = vector.extract_strided_slice %92 {offsets = [0, 0], sizes = [2, 32], strides = [1, 1]} : vector<2x128xf32> to vector<2x32xf32>
    %94 = vector.extract_strided_slice %92 {offsets = [0, 32], sizes = [2, 32], strides = [1, 1]} : vector<2x128xf32> to vector<2x32xf32>
    %95 = vector.extract_strided_slice %88 {offsets = [0, 64], sizes = [2, 32], strides = [1, 1]} : vector<2x128xf32> to vector<2x32xf32>
    %96 = vector.extract_strided_slice %92 {offsets = [0, 96], sizes = [2, 32], strides = [1, 1]} : vector<2x128xf32> to vector<2x32xf32>
    %97 = arith.mulf %94, %82 : vector<2x32xf32>
    %98 = arith.mulf %93, %95 : vector<2x32xf32>
    %99 = arith.addf %97, %98 : vector<2x32xf32>
    %100 = math.tanh %99 : vector<2x32xf32>
    %101 = arith.mulf %96, %100 : vector<2x32xf32>
    %102 = vector.extract_strided_slice %11 {offsets = [10, 0], sizes = [2, 128], strides = [1, 1]} : vector<16x128xf32> to vector<2x128xf32>
    %cst_29 = arith.constant dense<0.000000e+00> : vector<2x128xf32>
    %103 = tpu.matmul %101, %2, %cst_29 {dimension_numbers = #tpu.dot_dimension_numbers<[1], [0], [0], [1], [0, 0, 1, 1], [], []>} : vector<2x32xf32>, vector<32x128xf32>, vector<2x128xf32> -> vector<2x128xf32>
    %104 = arith.addf %102, %103 : vector<2x128xf32>
    %105 = math.tanh %104 : vector<2x128xf32>
    %cst_30 = arith.constant 5.000000e-01 : f32
    %106 = vector.broadcast %cst_30 : f32 to vector<2x128xf32>
    %107 = arith.mulf %106, %105 : vector<2x128xf32>
    %cst_31 = arith.constant 5.000000e-01 : f32
    %108 = vector.broadcast %cst_31 : f32 to vector<2x128xf32>
    %109 = arith.addf %107, %108 : vector<2x128xf32>
    %110 = vector.extract_strided_slice %109 {offsets = [0, 0], sizes = [2, 32], strides = [1, 1]} : vector<2x128xf32> to vector<2x32xf32>
    %111 = vector.extract_strided_slice %109 {offsets = [0, 32], sizes = [2, 32], strides = [1, 1]} : vector<2x128xf32> to vector<2x32xf32>
    %112 = vector.extract_strided_slice %105 {offsets = [0, 64], sizes = [2, 32], strides = [1, 1]} : vector<2x128xf32> to vector<2x32xf32>
    %113 = vector.extract_strided_slice %109 {offsets = [0, 96], sizes = [2, 32], strides = [1, 1]} : vector<2x128xf32> to vector<2x32xf32>
    %114 = arith.mulf %111, %99 : vector<2x32xf32>
    %115 = arith.mulf %110, %112 : vector<2x32xf32>
    %116 = arith.addf %114, %115 : vector<2x32xf32>
    %117 = math.tanh %116 : vector<2x32xf32>
    %118 = arith.mulf %113, %117 : vector<2x32xf32>
    %119 = vector.extract_strided_slice %11 {offsets = [12, 0], sizes = [2, 128], strides = [1, 1]} : vector<16x128xf32> to vector<2x128xf32>
    %cst_32 = arith.constant dense<0.000000e+00> : vector<2x128xf32>
    %120 = tpu.matmul %118, %2, %cst_32 {dimension_numbers = #tpu.dot_dimension_numbers<[1], [0], [0], [1], [0, 0, 1, 1], [], []>} : vector<2x32xf32>, vector<32x128xf32>, vector<2x128xf32> -> vector<2x128xf32>
    %121 = arith.addf %119, %120 : vector<2x128xf32>
    %122 = math.tanh %121 : vector<2x128xf32>
    %cst_33 = arith.constant 5.000000e-01 : f32
    %123 = vector.broadcast %cst_33 : f32 to vector<2x128xf32>
    %124 = arith.mulf %123, %122 : vector<2x128xf32>
    %cst_34 = arith.constant 5.000000e-01 : f32
    %125 = vector.broadcast %cst_34 : f32 to vector<2x128xf32>
    %126 = arith.addf %124, %125 : vector<2x128xf32>
    %127 = vector.extract_strided_slice %126 {offsets = [0, 0], sizes = [2, 32], strides = [1, 1]} : vector<2x128xf32> to vector<2x32xf32>
    %128 = vector.extract_strided_slice %126 {offsets = [0, 32], sizes = [2, 32], strides = [1, 1]} : vector<2x128xf32> to vector<2x32xf32>
    %129 = vector.extract_strided_slice %122 {offsets = [0, 64], sizes = [2, 32], strides = [1, 1]} : vector<2x128xf32> to vector<2x32xf32>
    %130 = vector.extract_strided_slice %126 {offsets = [0, 96], sizes = [2, 32], strides = [1, 1]} : vector<2x128xf32> to vector<2x32xf32>
    %131 = arith.mulf %128, %116 : vector<2x32xf32>
    %132 = arith.mulf %127, %129 : vector<2x32xf32>
    %133 = arith.addf %131, %132 : vector<2x32xf32>
    %134 = math.tanh %133 : vector<2x32xf32>
    %135 = arith.mulf %130, %134 : vector<2x32xf32>
    %136 = vector.extract_strided_slice %11 {offsets = [14, 0], sizes = [2, 128], strides = [1, 1]} : vector<16x128xf32> to vector<2x128xf32>
    %cst_35 = arith.constant dense<0.000000e+00> : vector<2x128xf32>
    %137 = tpu.matmul %135, %2, %cst_35 {dimension_numbers = #tpu.dot_dimension_numbers<[1], [0], [0], [1], [0, 0, 1, 1], [], []>} : vector<2x32xf32>, vector<32x128xf32>, vector<2x128xf32> -> vector<2x128xf32>
    %138 = arith.addf %136, %137 : vector<2x128xf32>
    %139 = math.tanh %138 : vector<2x128xf32>
    %cst_36 = arith.constant 5.000000e-01 : f32
    %140 = vector.broadcast %cst_36 : f32 to vector<2x128xf32>
    %141 = arith.mulf %140, %139 : vector<2x128xf32>
    %cst_37 = arith.constant 5.000000e-01 : f32
    %142 = vector.broadcast %cst_37 : f32 to vector<2x128xf32>
    %143 = arith.addf %141, %142 : vector<2x128xf32>
    %144 = vector.extract_strided_slice %143 {offsets = [0, 0], sizes = [2, 32], strides = [1, 1]} : vector<2x128xf32> to vector<2x32xf32>
    %145 = vector.extract_strided_slice %143 {offsets = [0, 32], sizes = [2, 32], strides = [1, 1]} : vector<2x128xf32> to vector<2x32xf32>
    %146 = vector.extract_strided_slice %139 {offsets = [0, 64], sizes = [2, 32], strides = [1, 1]} : vector<2x128xf32> to vector<2x32xf32>
    %147 = vector.extract_strided_slice %143 {offsets = [0, 96], sizes = [2, 32], strides = [1, 1]} : vector<2x128xf32> to vector<2x32xf32>
    %148 = arith.mulf %145, %133 : vector<2x32xf32>
    %149 = arith.mulf %144, %146 : vector<2x32xf32>
    %150 = arith.addf %148, %149 : vector<2x32xf32>
    %151 = math.tanh %150 : vector<2x32xf32>
    %152 = arith.mulf %147, %151 : vector<2x32xf32>
    %153 = tpu.iota {dimensions = array<i32: 1>} : vector<2x16xi32>
    %cst_38 = arith.constant dense<0.000000e+00> : vector<2x144xf32>
    %154 = tpu.matmul %152, %7, %cst_38 {dimension_numbers = #tpu.dot_dimension_numbers<[1], [0], [0], [1], [0, 0, 1, 1], [], []>} : vector<2x32xf32>, vector<32x144xf32>, vector<2x144xf32> -> vector<2x144xf32>
    %155 = vector.extract_strided_slice %154 {offsets = [0, 0], sizes = [2, 128], strides = [1, 1]} : vector<2x144xf32> to vector<2x128xf32>
    %156 = vector.extract_strided_slice %14 {offsets = [0, 0], sizes = [1, 128], strides = [1, 1]} : vector<16x128xf32> to vector<1x128xf32>
    %157 = vector.broadcast %156 : vector<1x128xf32> to vector<2x128xf32>
    %158 = arith.addf %157, %155 : vector<2x128xf32>
    %159 = math.tanh %158 : vector<2x128xf32>
    %cst_39 = arith.constant 5.000000e-01 : f32
    %160 = vector.broadcast %cst_39 : f32 to vector<2x128xf32>
    %161 = arith.mulf %160, %159 : vector<2x128xf32>
    %cst_40 = arith.constant 5.000000e-01 : f32
    %162 = vector.broadcast %cst_40 : f32 to vector<2x128xf32>
    %163 = arith.addf %161, %162 : vector<2x128xf32>
    %164 = vector.extract_strided_slice %163 {offsets = [0, 0], sizes = [2, 32], strides = [1, 1]} : vector<2x128xf32> to vector<2x32xf32>
    %165 = vector.extract_strided_slice %163 {offsets = [0, 32], sizes = [2, 32], strides = [1, 1]} : vector<2x128xf32> to vector<2x32xf32>
    %166 = vector.extract_strided_slice %159 {offsets = [0, 64], sizes = [2, 32], strides = [1, 1]} : vector<2x128xf32> to vector<2x32xf32>
    %167 = vector.extract_strided_slice %163 {offsets = [0, 96], sizes = [2, 32], strides = [1, 1]} : vector<2x128xf32> to vector<2x32xf32>
    %168 = arith.mulf %165, %150 : vector<2x32xf32>
    %169 = arith.mulf %164, %166 : vector<2x32xf32>
    %170 = arith.addf %168, %169 : vector<2x32xf32>
    %171 = math.tanh %170 : vector<2x32xf32>
    %172 = arith.mulf %167, %171 : vector<2x32xf32>
    %cst_41 = arith.constant dense<0.000000e+00> : vector<2x144xf32>
    %173 = tpu.matmul %172, %7, %cst_41 {dimension_numbers = #tpu.dot_dimension_numbers<[1], [0], [0], [1], [0, 0, 1, 1], [], []>} : vector<2x32xf32>, vector<32x144xf32>, vector<2x144xf32> -> vector<2x144xf32>
    %174 = vector.extract_strided_slice %173 {offsets = [0, 0], sizes = [2, 128], strides = [1, 1]} : vector<2x144xf32> to vector<2x128xf32>
    %175 = vector.extract_strided_slice %173 {offsets = [0, 128], sizes = [2, 16], strides = [1, 1]} : vector<2x144xf32> to vector<2x16xf32>
    %176 = vector.broadcast %6 : vector<1x16xf32> to vector<2x16xf32>
    %177 = arith.addf %175, %176 : vector<2x16xf32>
    %c0_42 = arith.constant 0 : index
    %c0_43 = arith.constant 0 : index
    %178 = vector.load %arg3[%c0_42, %c0_43] : memref<2x96xf32, #tpu.memory_space<vmem>>, vector<2x16xf32>
    tpu.vector_store %arg3[%c0_42, %c0_43], %177 {strides = array<i32>} : memref<2x96xf32, #tpu.memory_space<vmem>>, vector<2x16xf32>,
    %cst_44 = arith.constant dense<0xFF800000> : vector<2xf32>
    %179 = vector.multi_reduction <maximumf>, %177, %cst_44 [1] : vector<2x16xf32> to vector<2xf32>
    %180 = vector.shape_cast %179 : vector<2xf32> to vector<2x1xf32>
    %181 = vector.broadcast %180 : vector<2x1xf32> to vector<2x16xf32>
    %182 = arith.cmpf oeq, %177, %181 : vector<2x16xf32>
    %c16_i32 = arith.constant 16 : i32
    %183 = vector.broadcast %c16_i32 : i32 to vector<2x16xi32>
    %184 = arith.select %182, %153, %183 : vector<2x16xi1>, vector<2x16xi32>
    %cst_45 = arith.constant dense<2147483647> : vector<2xi32>
    %185 = vector.multi_reduction <minsi>, %184, %cst_45 [1] : vector<2x16xi32> to vector<2xi32>
    %186 = vector.shape_cast %185 : vector<2xi32> to vector<2x1xi32>
    %187 = vector.broadcast %186 : vector<2x1xi32> to vector<2x16xi32>
    %188 = arith.cmpi eq, %153, %187 : vector<2x16xi32>
    %189 = arith.extui %188 : vector<2x16xi1> to vector<2x16xi32>
    %190 = arith.sitofp %189 : vector<2x16xi32> to vector<2x16xf32>
    %cst_46 = arith.constant dense<0.000000e+00> : vector<2x128xf32>
    %191 = tpu.matmul %190, %14, %cst_46 {dimension_numbers = #tpu.dot_dimension_numbers<[1], [0], [0], [1], [0, 0, 1, 1], [], []>} : vector<2x16xf32>, vector<16x128xf32>, vector<2x128xf32> -> vector<2x128xf32>
    %192 = arith.addf %191, %174 : vector<2x128xf32>
    %193 = math.tanh %192 : vector<2x128xf32>
    %cst_47 = arith.constant 5.000000e-01 : f32
    %194 = vector.broadcast %cst_47 : f32 to vector<2x128xf32>
    %195 = arith.mulf %194, %193 : vector<2x128xf32>
    %cst_48 = arith.constant 5.000000e-01 : f32
    %196 = vector.broadcast %cst_48 : f32 to vector<2x128xf32>
    %197 = arith.addf %195, %196 : vector<2x128xf32>
    %198 = vector.extract_strided_slice %197 {offsets = [0, 0], sizes = [2, 32], strides = [1, 1]} : vector<2x128xf32> to vector<2x32xf32>
    %199 = vector.extract_strided_slice %197 {offsets = [0, 32], sizes = [2, 32], strides = [1, 1]} : vector<2x128xf32> to vector<2x32xf32>
    %200 = vector.extract_strided_slice %193 {offsets = [0, 64], sizes = [2, 32], strides = [1, 1]} : vector<2x128xf32> to vector<2x32xf32>
    %201 = vector.extract_strided_slice %197 {offsets = [0, 96], sizes = [2, 32], strides = [1, 1]} : vector<2x128xf32> to vector<2x32xf32>
    %202 = arith.mulf %199, %170 : vector<2x32xf32>
    %203 = arith.mulf %198, %200 : vector<2x32xf32>
    %204 = arith.addf %202, %203 : vector<2x32xf32>
    %205 = math.tanh %204 : vector<2x32xf32>
    %206 = arith.mulf %201, %205 : vector<2x32xf32>
    %cst_49 = arith.constant dense<0.000000e+00> : vector<2x144xf32>
    %207 = tpu.matmul %206, %7, %cst_49 {dimension_numbers = #tpu.dot_dimension_numbers<[1], [0], [0], [1], [0, 0, 1, 1], [], []>} : vector<2x32xf32>, vector<32x144xf32>, vector<2x144xf32> -> vector<2x144xf32>
    %208 = vector.extract_strided_slice %207 {offsets = [0, 0], sizes = [2, 128], strides = [1, 1]} : vector<2x144xf32> to vector<2x128xf32>
    %209 = vector.extract_strided_slice %207 {offsets = [0, 128], sizes = [2, 16], strides = [1, 1]} : vector<2x144xf32> to vector<2x16xf32>
    %210 = vector.broadcast %6 : vector<1x16xf32> to vector<2x16xf32>
    %211 = arith.addf %209, %210 : vector<2x16xf32>
    %c0_50 = arith.constant 0 : index
    %c16_51 = arith.constant 16 : index
    %212 = vector.load %arg3[%c0_50, %c16_51] : memref<2x96xf32, #tpu.memory_space<vmem>>, vector<2x16xf32>
    tpu.vector_store %arg3[%c0_50, %c16_51], %211 {strides = array<i32>} : memref<2x96xf32, #tpu.memory_space<vmem>>, vector<2x16xf32>,
    %cst_52 = arith.constant dense<0xFF800000> : vector<2xf32>
    %213 = vector.multi_reduction <maximumf>, %211, %cst_52 [1] : vector<2x16xf32> to vector<2xf32>
    %214 = vector.shape_cast %213 : vector<2xf32> to vector<2x1xf32>
    %215 = vector.broadcast %214 : vector<2x1xf32> to vector<2x16xf32>
    %216 = arith.cmpf oeq, %211, %215 : vector<2x16xf32>
    %c16_i32_53 = arith.constant 16 : i32
    %217 = vector.broadcast %c16_i32_53 : i32 to vector<2x16xi32>
    %218 = arith.select %216, %153, %217 : vector<2x16xi1>, vector<2x16xi32>
    %cst_54 = arith.constant dense<2147483647> : vector<2xi32>
    %219 = vector.multi_reduction <minsi>, %218, %cst_54 [1] : vector<2x16xi32> to vector<2xi32>
    %220 = vector.shape_cast %219 : vector<2xi32> to vector<2x1xi32>
    %221 = vector.broadcast %220 : vector<2x1xi32> to vector<2x16xi32>
    %222 = arith.cmpi eq, %153, %221 : vector<2x16xi32>
    %223 = arith.extui %222 : vector<2x16xi1> to vector<2x16xi32>
    %224 = arith.sitofp %223 : vector<2x16xi32> to vector<2x16xf32>
    %cst_55 = arith.constant dense<0.000000e+00> : vector<2x128xf32>
    %225 = tpu.matmul %224, %14, %cst_55 {dimension_numbers = #tpu.dot_dimension_numbers<[1], [0], [0], [1], [0, 0, 1, 1], [], []>} : vector<2x16xf32>, vector<16x128xf32>, vector<2x128xf32> -> vector<2x128xf32>
    %226 = arith.addf %225, %208 : vector<2x128xf32>
    %227 = math.tanh %226 : vector<2x128xf32>
    %cst_56 = arith.constant 5.000000e-01 : f32
    %228 = vector.broadcast %cst_56 : f32 to vector<2x128xf32>
    %229 = arith.mulf %228, %227 : vector<2x128xf32>
    %cst_57 = arith.constant 5.000000e-01 : f32
    %230 = vector.broadcast %cst_57 : f32 to vector<2x128xf32>
    %231 = arith.addf %229, %230 : vector<2x128xf32>
    %232 = vector.extract_strided_slice %231 {offsets = [0, 0], sizes = [2, 32], strides = [1, 1]} : vector<2x128xf32> to vector<2x32xf32>
    %233 = vector.extract_strided_slice %231 {offsets = [0, 32], sizes = [2, 32], strides = [1, 1]} : vector<2x128xf32> to vector<2x32xf32>
    %234 = vector.extract_strided_slice %227 {offsets = [0, 64], sizes = [2, 32], strides = [1, 1]} : vector<2x128xf32> to vector<2x32xf32>
    %235 = vector.extract_strided_slice %231 {offsets = [0, 96], sizes = [2, 32], strides = [1, 1]} : vector<2x128xf32> to vector<2x32xf32>
    %236 = arith.mulf %233, %204 : vector<2x32xf32>
    %237 = arith.mulf %232, %234 : vector<2x32xf32>
    %238 = arith.addf %236, %237 : vector<2x32xf32>
    %239 = math.tanh %238 : vector<2x32xf32>
    %240 = arith.mulf %235, %239 : vector<2x32xf32>
    %cst_58 = arith.constant dense<0.000000e+00> : vector<2x144xf32>
    %241 = tpu.matmul %240, %7, %cst_58 {dimension_numbers = #tpu.dot_dimension_numbers<[1], [0], [0], [1], [0, 0, 1, 1], [], []>} : vector<2x32xf32>, vector<32x144xf32>, vector<2x144xf32> -> vector<2x144xf32>
    %242 = vector.extract_strided_slice %241 {offsets = [0, 0], sizes = [2, 128], strides = [1, 1]} : vector<2x144xf32> to vector<2x128xf32>
    %243 = vector.extract_strided_slice %241 {offsets = [0, 128], sizes = [2, 16], strides = [1, 1]} : vector<2x144xf32> to vector<2x16xf32>
    %244 = vector.broadcast %6 : vector<1x16xf32> to vector<2x16xf32>
    %245 = arith.addf %243, %244 : vector<2x16xf32>
    %c0_59 = arith.constant 0 : index
    %c32 = arith.constant 32 : index
    %246 = vector.load %arg3[%c0_59, %c32] : memref<2x96xf32, #tpu.memory_space<vmem>>, vector<2x16xf32>
    tpu.vector_store %arg3[%c0_59, %c32], %245 {strides = array<i32>} : memref<2x96xf32, #tpu.memory_space<vmem>>, vector<2x16xf32>,
    %cst_60 = arith.constant dense<0xFF800000> : vector<2xf32>
    %247 = vector.multi_reduction <maximumf>, %245, %cst_60 [1] : vector<2x16xf32> to vector<2xf32>
    %248 = vector.shape_cast %247 : vector<2xf32> to vector<2x1xf32>
    %249 = vector.broadcast %248 : vector<2x1xf32> to vector<2x16xf32>
    %250 = arith.cmpf oeq, %245, %249 : vector<2x16xf32>
    %c16_i32_61 = arith.constant 16 : i32
    %251 = vector.broadcast %c16_i32_61 : i32 to vector<2x16xi32>
    %252 = arith.select %250, %153, %251 : vector<2x16xi1>, vector<2x16xi32>
    %cst_62 = arith.constant dense<2147483647> : vector<2xi32>
    %253 = vector.multi_reduction <minsi>, %252, %cst_62 [1] : vector<2x16xi32> to vector<2xi32>
    %254 = vector.shape_cast %253 : vector<2xi32> to vector<2x1xi32>
    %255 = vector.broadcast %254 : vector<2x1xi32> to vector<2x16xi32>
    %256 = arith.cmpi eq, %153, %255 : vector<2x16xi32>
    %257 = arith.extui %256 : vector<2x16xi1> to vector<2x16xi32>
    %258 = arith.sitofp %257 : vector<2x16xi32> to vector<2x16xf32>
    %cst_63 = arith.constant dense<0.000000e+00> : vector<2x128xf32>
    %259 = tpu.matmul %258, %14, %cst_63 {dimension_numbers = #tpu.dot_dimension_numbers<[1], [0], [0], [1], [0, 0, 1, 1], [], []>} : vector<2x16xf32>, vector<16x128xf32>, vector<2x128xf32> -> vector<2x128xf32>
    %260 = arith.addf %259, %242 : vector<2x128xf32>
    %261 = math.tanh %260 : vector<2x128xf32>
    %cst_64 = arith.constant 5.000000e-01 : f32
    %262 = vector.broadcast %cst_64 : f32 to vector<2x128xf32>
    %263 = arith.mulf %262, %261 : vector<2x128xf32>
    %cst_65 = arith.constant 5.000000e-01 : f32
    %264 = vector.broadcast %cst_65 : f32 to vector<2x128xf32>
    %265 = arith.addf %263, %264 : vector<2x128xf32>
    %266 = vector.extract_strided_slice %265 {offsets = [0, 0], sizes = [2, 32], strides = [1, 1]} : vector<2x128xf32> to vector<2x32xf32>
    %267 = vector.extract_strided_slice %265 {offsets = [0, 32], sizes = [2, 32], strides = [1, 1]} : vector<2x128xf32> to vector<2x32xf32>
    %268 = vector.extract_strided_slice %261 {offsets = [0, 64], sizes = [2, 32], strides = [1, 1]} : vector<2x128xf32> to vector<2x32xf32>
    %269 = vector.extract_strided_slice %265 {offsets = [0, 96], sizes = [2, 32], strides = [1, 1]} : vector<2x128xf32> to vector<2x32xf32>
    %270 = arith.mulf %267, %238 : vector<2x32xf32>
    %271 = arith.mulf %266, %268 : vector<2x32xf32>
    %272 = arith.addf %270, %271 : vector<2x32xf32>
    %273 = math.tanh %272 : vector<2x32xf32>
    %274 = arith.mulf %269, %273 : vector<2x32xf32>
    %cst_66 = arith.constant dense<0.000000e+00> : vector<2x144xf32>
    %275 = tpu.matmul %274, %7, %cst_66 {dimension_numbers = #tpu.dot_dimension_numbers<[1], [0], [0], [1], [0, 0, 1, 1], [], []>} : vector<2x32xf32>, vector<32x144xf32>, vector<2x144xf32> -> vector<2x144xf32>
    %276 = vector.extract_strided_slice %275 {offsets = [0, 0], sizes = [2, 128], strides = [1, 1]} : vector<2x144xf32> to vector<2x128xf32>
    %277 = vector.extract_strided_slice %275 {offsets = [0, 128], sizes = [2, 16], strides = [1, 1]} : vector<2x144xf32> to vector<2x16xf32>
    %278 = vector.broadcast %6 : vector<1x16xf32> to vector<2x16xf32>
    %279 = arith.addf %277, %278 : vector<2x16xf32>
    %c0_67 = arith.constant 0 : index
    %c48_68 = arith.constant 48 : index
    %280 = vector.load %arg3[%c0_67, %c48_68] : memref<2x96xf32, #tpu.memory_space<vmem>>, vector<2x16xf32>
    tpu.vector_store %arg3[%c0_67, %c48_68], %279 {strides = array<i32>} : memref<2x96xf32, #tpu.memory_space<vmem>>, vector<2x16xf32>,
    %cst_69 = arith.constant dense<0xFF800000> : vector<2xf32>
    %281 = vector.multi_reduction <maximumf>, %279, %cst_69 [1] : vector<2x16xf32> to vector<2xf32>
    %282 = vector.shape_cast %281 : vector<2xf32> to vector<2x1xf32>
    %283 = vector.broadcast %282 : vector<2x1xf32> to vector<2x16xf32>
    %284 = arith.cmpf oeq, %279, %283 : vector<2x16xf32>
    %c16_i32_70 = arith.constant 16 : i32
    %285 = vector.broadcast %c16_i32_70 : i32 to vector<2x16xi32>
    %286 = arith.select %284, %153, %285 : vector<2x16xi1>, vector<2x16xi32>
    %cst_71 = arith.constant dense<2147483647> : vector<2xi32>
    %287 = vector.multi_reduction <minsi>, %286, %cst_71 [1] : vector<2x16xi32> to vector<2xi32>
    %288 = vector.shape_cast %287 : vector<2xi32> to vector<2x1xi32>
    %289 = vector.broadcast %288 : vector<2x1xi32> to vector<2x16xi32>
    %290 = arith.cmpi eq, %153, %289 : vector<2x16xi32>
    %291 = arith.extui %290 : vector<2x16xi1> to vector<2x16xi32>
    %292 = arith.sitofp %291 : vector<2x16xi32> to vector<2x16xf32>
    %cst_72 = arith.constant dense<0.000000e+00> : vector<2x128xf32>
    %293 = tpu.matmul %292, %14, %cst_72 {dimension_numbers = #tpu.dot_dimension_numbers<[1], [0], [0], [1], [0, 0, 1, 1], [], []>} : vector<2x16xf32>, vector<16x128xf32>, vector<2x128xf32> -> vector<2x128xf32>
    %294 = arith.addf %293, %276 : vector<2x128xf32>
    %295 = math.tanh %294 : vector<2x128xf32>
    %cst_73 = arith.constant 5.000000e-01 : f32
    %296 = vector.broadcast %cst_73 : f32 to vector<2x128xf32>
    %297 = arith.mulf %296, %295 : vector<2x128xf32>
    %cst_74 = arith.constant 5.000000e-01 : f32
    %298 = vector.broadcast %cst_74 : f32 to vector<2x128xf32>
    %299 = arith.addf %297, %298 : vector<2x128xf32>
    %300 = vector.extract_strided_slice %299 {offsets = [0, 0], sizes = [2, 32], strides = [1, 1]} : vector<2x128xf32> to vector<2x32xf32>
    %301 = vector.extract_strided_slice %299 {offsets = [0, 32], sizes = [2, 32], strides = [1, 1]} : vector<2x128xf32> to vector<2x32xf32>
    %302 = vector.extract_strided_slice %295 {offsets = [0, 64], sizes = [2, 32], strides = [1, 1]} : vector<2x128xf32> to vector<2x32xf32>
    %303 = vector.extract_strided_slice %299 {offsets = [0, 96], sizes = [2, 32], strides = [1, 1]} : vector<2x128xf32> to vector<2x32xf32>
    %304 = arith.mulf %301, %272 : vector<2x32xf32>
    %305 = arith.mulf %300, %302 : vector<2x32xf32>
    %306 = arith.addf %304, %305 : vector<2x32xf32>
    %307 = math.tanh %306 : vector<2x32xf32>
    %308 = arith.mulf %303, %307 : vector<2x32xf32>
    %cst_75 = arith.constant dense<0.000000e+00> : vector<2x144xf32>
    %309 = tpu.matmul %308, %7, %cst_75 {dimension_numbers = #tpu.dot_dimension_numbers<[1], [0], [0], [1], [0, 0, 1, 1], [], []>} : vector<2x32xf32>, vector<32x144xf32>, vector<2x144xf32> -> vector<2x144xf32>
    %310 = vector.extract_strided_slice %309 {offsets = [0, 0], sizes = [2, 128], strides = [1, 1]} : vector<2x144xf32> to vector<2x128xf32>
    %311 = vector.extract_strided_slice %309 {offsets = [0, 128], sizes = [2, 16], strides = [1, 1]} : vector<2x144xf32> to vector<2x16xf32>
    %312 = vector.broadcast %6 : vector<1x16xf32> to vector<2x16xf32>
    %313 = arith.addf %311, %312 : vector<2x16xf32>
    %c0_76 = arith.constant 0 : index
    %c64_77 = arith.constant 64 : index
    %314 = vector.load %arg3[%c0_76, %c64_77] : memref<2x96xf32, #tpu.memory_space<vmem>>, vector<2x16xf32>
    tpu.vector_store %arg3[%c0_76, %c64_77], %313 {strides = array<i32>} : memref<2x96xf32, #tpu.memory_space<vmem>>, vector<2x16xf32>,
    %cst_78 = arith.constant dense<0xFF800000> : vector<2xf32>
    %315 = vector.multi_reduction <maximumf>, %313, %cst_78 [1] : vector<2x16xf32> to vector<2xf32>
    %316 = vector.shape_cast %315 : vector<2xf32> to vector<2x1xf32>
    %317 = vector.broadcast %316 : vector<2x1xf32> to vector<2x16xf32>
    %318 = arith.cmpf oeq, %313, %317 : vector<2x16xf32>
    %c16_i32_79 = arith.constant 16 : i32
    %319 = vector.broadcast %c16_i32_79 : i32 to vector<2x16xi32>
    %320 = arith.select %318, %153, %319 : vector<2x16xi1>, vector<2x16xi32>
    %cst_80 = arith.constant dense<2147483647> : vector<2xi32>
    %321 = vector.multi_reduction <minsi>, %320, %cst_80 [1] : vector<2x16xi32> to vector<2xi32>
    %322 = vector.shape_cast %321 : vector<2xi32> to vector<2x1xi32>
    %323 = vector.broadcast %322 : vector<2x1xi32> to vector<2x16xi32>
    %324 = arith.cmpi eq, %153, %323 : vector<2x16xi32>
    %325 = arith.extui %324 : vector<2x16xi1> to vector<2x16xi32>
    %326 = arith.sitofp %325 : vector<2x16xi32> to vector<2x16xf32>
    %cst_81 = arith.constant dense<0.000000e+00> : vector<2x128xf32>
    %327 = tpu.matmul %326, %14, %cst_81 {dimension_numbers = #tpu.dot_dimension_numbers<[1], [0], [0], [1], [0, 0, 1, 1], [], []>} : vector<2x16xf32>, vector<16x128xf32>, vector<2x128xf32> -> vector<2x128xf32>
    %328 = arith.addf %327, %310 : vector<2x128xf32>
    %329 = math.tanh %328 : vector<2x128xf32>
    %cst_82 = arith.constant 5.000000e-01 : f32
    %330 = vector.broadcast %cst_82 : f32 to vector<2x128xf32>
    %331 = arith.mulf %330, %329 : vector<2x128xf32>
    %cst_83 = arith.constant 5.000000e-01 : f32
    %332 = vector.broadcast %cst_83 : f32 to vector<2x128xf32>
    %333 = arith.addf %331, %332 : vector<2x128xf32>
    %334 = vector.extract_strided_slice %333 {offsets = [0, 0], sizes = [2, 32], strides = [1, 1]} : vector<2x128xf32> to vector<2x32xf32>
    %335 = vector.extract_strided_slice %333 {offsets = [0, 32], sizes = [2, 32], strides = [1, 1]} : vector<2x128xf32> to vector<2x32xf32>
    %336 = vector.extract_strided_slice %329 {offsets = [0, 64], sizes = [2, 32], strides = [1, 1]} : vector<2x128xf32> to vector<2x32xf32>
    %337 = vector.extract_strided_slice %333 {offsets = [0, 96], sizes = [2, 32], strides = [1, 1]} : vector<2x128xf32> to vector<2x32xf32>
    %338 = arith.mulf %335, %306 : vector<2x32xf32>
    %339 = arith.mulf %334, %336 : vector<2x32xf32>
    %340 = arith.addf %338, %339 : vector<2x32xf32>
    %341 = math.tanh %340 : vector<2x32xf32>
    %342 = arith.mulf %337, %341 : vector<2x32xf32>
    %cst_84 = arith.constant dense<0.000000e+00> : vector<2x144xf32>
    %343 = tpu.matmul %342, %7, %cst_84 {dimension_numbers = #tpu.dot_dimension_numbers<[1], [0], [0], [1], [0, 0, 1, 1], [], []>} : vector<2x32xf32>, vector<32x144xf32>, vector<2x144xf32> -> vector<2x144xf32>
    %344 = vector.extract_strided_slice %343 {offsets = [0, 128], sizes = [2, 16], strides = [1, 1]} : vector<2x144xf32> to vector<2x16xf32>
    %345 = vector.broadcast %6 : vector<1x16xf32> to vector<2x16xf32>
    %346 = arith.addf %344, %345 : vector<2x16xf32>
    %c0_85 = arith.constant 0 : index
    %c80_86 = arith.constant 80 : index
    %347 = vector.load %arg3[%c0_85, %c80_86] : memref<2x96xf32, #tpu.memory_space<vmem>>, vector<2x16xf32>
    tpu.vector_store %arg3[%c0_85, %c80_86], %346 {strides = array<i32>} : memref<2x96xf32, #tpu.memory_space<vmem>>, vector<2x16xf32>,
    return
  }
}

</mosaic_0001>

<llo_original>
// kernel: autoregressive_lstm.1
$region0: #{autoregressive_lstm.1}
  #allocation0 [shape = 'u32[]', space=smem, size = 0x4, offset = 0x4, fixed_abs, tag = 'smem constant byte address 0x4 - core index']
  #allocation1 [shape = 'u32[144,128]{1,0:T(1,128)}', space=vmem, size = 0x12000, scoped, tag = 'internal scratch']
  %s0 = inlined_call_operand.vmem [shape: f32[16,4], index: 0, kind: input, shape index: {}]
  %s1 = inlined_call_operand.vmem [shape: f32[88,128], index: 1, kind: input, shape index: {}]
  %s2 = inlined_call_operand.vmem [shape: f32[32,144], index: 2, kind: input, shape index: {}]
  %s3 = inlined_call_operand.vmem [shape: f32[2,96], index: 3, kind: output, shape index: {}]
  %s4 = sld [smem:[#allocation0]]
  $region22: #{autoregressive_lstm.1} parent=0
    _
  %s6 = ssub.s32 1, %s4
  %s7 = scalar_select 0, %s6, %s4
  // Predicated region
  $region2: #{autoregressive_lstm.1} parent=0 // pred_check
    _
  $region3: #{autoregressive_lstm.1} parent=0 // pred_check_branch
    %9 = sbr.rel (0) target = $region5
  $region4: #{autoregressive_lstm.1} parent=0 // pred_region
    _
  $region5: #{autoregressive_lstm.1} parent=0 // pred_fallthru
    _
  // Predicated region
  $region6: #{autoregressive_lstm.1} parent=0 // pred_check
    _
  $region7: #{autoregressive_lstm.1} parent=0 // pred_check_branch
    %11 = sbr.rel (0) target = $region9
  $region8: #{autoregressive_lstm.1} parent=0 // pred_region
    _
  $region9: #{autoregressive_lstm.1} parent=0 // pred_fallthru
    _
  // Predicated region
  $region10: #{autoregressive_lstm.1} parent=0 // pred_check
    _
  $region11: #{autoregressive_lstm.1} parent=0 // pred_check_branch
    %13 = sbr.rel (0) target = $region13
  $region12: #{autoregressive_lstm.1} parent=0 // pred_region
    _
  $region13: #{autoregressive_lstm.1} parent=0 // pred_fallthru
    _
  %v14 = vld [vmem:[%s1] sm:$0xf]
  %v15 = vld [vmem:[%s1 + $0x8] sm:$0x1]
  %v16 = vld [vmem:[%s1 + $0x10] sm:$0xff]
  %v17 = vld [vmem:[%s1 + $0x18] sm:$0xff]
  %v18 = vld [vmem:[%s1 + $0x20] sm:$0xff]
  %v19 = vld [vmem:[%s1 + $0x28] sm:$0xff]
  %v20 = vld [vmem:[%s1 + $0x30] sm:$0xff]
  %v21 = vld [vmem:[%s1 + $0x38] sm:$0x1]
  %v22 = vld [vmem:[%s1 + $0x40] sm:$0xff]
  %v23 = vld [vmem:[%s1 + $0x48] sm:$0xff]
  %v24 = vld [vmem:[%s1 + $0x50] sm:$0x1]
  %v25 = vld [vmem:[%s2] sm:$0xff]
  %v26 = vld [vmem:[%s2 + $0x8] sm:$0xff]
  %v27 = vld [vmem:[%s2 + $0x10] sm:$0xff]
  %v28 = vld [vmem:[%s2 + $0x18] sm:$0xff]
  %v29 = vld [vmem:[%s2 + $0x20] sm:$0xff]
  %v30 = vld [vmem:[%s2 + $0x28] sm:$0xff]
  %v31 = vld [vmem:[%s2 + $0x30] sm:$0xff]
  %v32 = vld [vmem:[%s2 + $0x38] sm:$0xff]
  %v33 = vld [vmem:[%s0] sm:$0xff]
  %v34 = vld [vmem:[%s0 + $0x8] sm:$0xff]
  %v35 = vlaneseq
  %v36 = vshrl.u32 %v35, 7
  %v37 = vsub.s32 0, %v36
  %v38 = vrot.slane %v15, %v37
  %vm39 = vcmask 31744
  %v41 = vsel %vm39, %v33, 0
  %v44 = vsel %vm39, %v34, 0
  %vm46 = vcmask 1043456
  %v48 = vsel %vm46, %v14, 0
  %50 = vmatprep.subr.mxu0 0.0
  %51 = vmatpush1.msra.mxu0 %v48
  %52 = vmatprep.subr.mxu0 0.0
  %53 = vmatpush1.msra.mxu0 0.0
  %54 = vmatprep.subr.mxu0 0.0
  %55 = vmatpush1.msra.mxu0 0.0
  %56 = vmatprep.subr.mxu0 0.0
  %57 = vmatpush1.msra.mxu0 0.0
  %58 = vmatprep.subr.mxu0 0.0
  %59 = vmatpush1.msra.mxu0 0.0
  %60 = vmatprep.subr.mxu0 0.0
  %61 = vmatpush1.msra.mxu0 0.0
  %62 = vmatprep.subr.mxu0 0.0
  %63 = vmatpush1.msra.mxu0 0.0
  %64 = vmatprep.subr.mxu0 0.0
  %65 = vmatpush1.msra.mxu0 0.0
  %66 = vmatprep.subr.mxu0 0.0
  %67 = vmatpush1.msra.mxu0 0.0
  %68 = vmatprep.subr.mxu0 0.0
  %69 = vmatpush1.msra.mxu0 0.0
  %70 = vmatprep.subr.mxu0 0.0
  %71 = vmatpush1.msra.mxu0 0.0
  %72 = vmatprep.subr.mxu0 0.0
  %73 = vmatpush1.msra.mxu0 0.0
  %74 = vmatprep.subr.mxu0 0.0
  %75 = vmatpush1.msra.mxu0 0.0
  %76 = vmatprep.subr.mxu0 0.0
  %77 = vmatpush1.msra.mxu0 0.0
  %78 = vmatprep.subr.mxu0 0.0
  %79 = vmatpush1.msra.mxu0 0.0
  %80 = vmatprep.subr.mxu0 0.0
  %81 = vmatpush1.msra.mxu0 0.0
  %82 = vmatprep.subr.mxu0 0.0
  %83 = vmatpush1.msra.mxu0 0.0
  %84 = vmatprep.subr.mxu0 0.0
  %85 = vmatpush1.msra.mxu0 0.0
  %86 = vmatprep.subr.mxu0 0.0
  %87 = vmatpush1.msra.mxu0 0.0
  %88 = vmatprep.subr.mxu0 0.0
  %89 = vmatpush1.msra.mxu0 0.0
  %90 = vmatprep.subr.mxu0 0.0
  %91 = vmatpush1.msra.mxu0 0.0
  %92 = vmatprep.subr.mxu0 0.0
  %93 = vmatpush1.msra.mxu0 0.0
  %94 = vmatprep.subr.mxu0 0.0
  %95 = vmatpush1.msra.mxu0 0.0
  %96 = vmatprep.subr.mxu0 0.0
  %97 = vmatpush1.msra.mxu0 0.0
  %98 = vmatprep.subr.mxu0 0.0
  %99 = vmatpush1.msra.mxu0 0.0
  %100 = vmatprep.subr.mxu0 0.0
  %101 = vmatpush1.msra.mxu0 0.0
  %102 = vmatprep.subr.mxu0 0.0
  %103 = vmatpush1.msra.mxu0 0.0
  %104 = vmatprep.subr.mxu0 0.0
  %105 = vmatpush1.msra.mxu0 0.0
  %106 = vmatprep.subr.mxu0 0.0
  %107 = vmatpush1.msra.mxu0 0.0
  %108 = vmatprep.subr.mxu0 0.0
  %109 = vmatpush1.msra.mxu0 0.0
  %110 = vmatprep.subr.mxu0 0.0
  %111 = vmatpush1.msra.mxu0 0.0
  %112 = vmatprep.subr.mxu0 0.0
  %113 = vmatpush1.msra.mxu0 0.0
  %114 = vmatprep.mubr.f32.mxu0 0.0
  %115 = vmatmul.mubr.f32.gmra.mrb[0].mxu0 %v41
  %v116 = vpop.f32.mrb[0].mxu0
  %v117 = vadd.f32 %v38, %v116
  %v118 = vpop.f32.mrb[0].mxu0
  %119 = vmatprep.mubr.f32.mxu0 0.0
  %120 = vmatmul.mubr.f32.gmra.mrb[0].mxu0 %v44
  %v121 = vpop.f32.mrb[0].mxu0
  %v122 = vadd.f32 %v38, %v121
  %v123 = vpop.f32.mrb[0].mxu0
  %124 = vdwg.mxu0
  %v125 = vlaneseq
  %v126 = vshrl.u32 %v125, 7
  %v127 = vsub.s32 0, %v126
  %v128 = vrot.slane %v21, %v127
  %vm129 = vcmask 64512
  %v131 = vsel %vm129, %v22, 0
  %v134 = vsel %vm129, %v23, 0
  %136 = vmatprep.subr.mxu0 0.0
  %137 = vmatpush1.msra.mxu0 %v20
  %138 = vmatprep.subr.mxu0 0.0
  %139 = vmatpush1.msra.mxu0 0.0
  %140 = vmatprep.subr.mxu0 0.0
  %141 = vmatpush1.msra.mxu0 0.0
  %142 = vmatprep.subr.mxu0 0.0
  %143 = vmatpush1.msra.mxu0 0.0
  %144 = vmatprep.subr.mxu0 0.0
  %145 = vmatpush1.msra.mxu0 0.0
  %146 = vmatprep.subr.mxu0 0.0
  %147 = vmatpush1.msra.mxu0 0.0
  %148 = vmatprep.subr.mxu0 0.0
  %149 = vmatpush1.msra.mxu0 0.0
  %150 = vmatprep.subr.mxu0 0.0
  %151 = vmatpush1.msra.mxu0 0.0
  %152 = vmatprep.subr.mxu0 0.0
  %153 = vmatpush1.msra.mxu0 0.0
  %154 = vmatprep.subr.mxu0 0.0
  %155 = vmatpush1.msra.mxu0 0.0
  %156 = vmatprep.subr.mxu0 0.0
  %157 = vmatpush1.msra.mxu0 0.0
  %158 = vmatprep.subr.mxu0 0.0
  %159 = vmatpush1.msra.mxu0 0.0
  %160 = vmatprep.subr.mxu0 0.0
  %161 = vmatpush1.msra.mxu0 0.0
  %162 = vmatprep.subr.mxu0 0.0
  %163 = vmatpush1.msra.mxu0 0.0
  %164 = vmatprep.subr.mxu0 0.0
  %165 = vmatpush1.msra.mxu0 0.0
  %166 = vmatprep.subr.mxu0 0.0
  %167 = vmatpush1.msra.mxu0 0.0
  %168 = vmatprep.subr.mxu0 0.0
  %169 = vmatpush1.msra.mxu0 0.0
  %170 = vmatprep.subr.mxu0 0.0
  %171 = vmatpush1.msra.mxu0 0.0
  %172 = vmatprep.subr.mxu0 0.0
  %173 = vmatpush1.msra.mxu0 0.0
  %174 = vmatprep.subr.mxu0 0.0
  %175 = vmatpush1.msra.mxu0 0.0
  %176 = vmatprep.subr.mxu0 0.0
  %177 = vmatpush1.msra.mxu0 0.0
  %178 = vmatprep.subr.mxu0 0.0
  %179 = vmatpush1.msra.mxu0 0.0
  %180 = vmatprep.subr.mxu0 0.0
  %181 = vmatpush1.msra.mxu0 0.0
  %182 = vmatprep.subr.mxu0 0.0
  %183 = vmatpush1.msra.mxu0 0.0
  %184 = vmatprep.subr.mxu0 0.0
  %185 = vmatpush1.msra.mxu0 0.0
  %186 = vmatprep.subr.mxu0 0.0
  %187 = vmatpush1.msra.mxu0 0.0
  %188 = vmatprep.subr.mxu0 0.0
  %189 = vmatpush1.msra.mxu0 0.0
  %190 = vmatprep.subr.mxu0 0.0
  %191 = vmatpush1.msra.mxu0 0.0
  %192 = vmatprep.subr.mxu0 0.0
  %193 = vmatpush1.msra.mxu0 0.0
  %194 = vmatprep.subr.mxu0 0.0
  %195 = vmatpush1.msra.mxu0 0.0
  %196 = vmatprep.subr.mxu0 0.0
  %197 = vmatpush1.msra.mxu0 0.0
  %198 = vmatprep.subr.mxu0 0.0
  %199 = vmatpush1.msra.mxu0 0.0
  %200 = vmatprep.mubr.f32.mxu0 0.0
  %201 = vmatmul.mubr.f32.gmra.mrb[0].mxu0 %v131
  %v202 = vpop.f32.mrb[0].mxu0
  %v203 = vadd.f32 %v128, %v202
  %v204 = vpop.f32.mrb[0].mxu0
  %205 = vmatprep.mubr.f32.mxu0 0.0
  %206 = vmatmul.mubr.f32.gmra.mrb[0].mxu0 %v134
  %v207 = vpop.f32.mrb[0].mxu0
  %v208 = vadd.f32 %v128, %v207
  %v209 = vpop.f32.mrb[0].mxu0
  %210 = vdwg.mxu0
  %vm211 = vcmask 261120
  %v213 = vsel %vm211, 0.0, 0
  %215 = vmatprep.subr.mxu0 0.0
  %216 = vmatpush1.msra.mxu0 %v16
  %217 = vmatprep.subr.mxu0 0.0
  %218 = vmatpush1.msra.mxu0 %v17
  %219 = vmatprep.subr.mxu0 0.0
  %220 = vmatpush1.msra.mxu0 %v18
  %221 = vmatprep.subr.mxu0 0.0
  %222 = vmatpush1.msra.mxu0 %v19
  %223 = vmatprep.subr.mxu0 0.0
  %224 = vmatpush1.msra.mxu0 0.0
  %225 = vmatprep.subr.mxu0 0.0
  %226 = vmatpush1.msra.mxu0 0.0
  %227 = vmatprep.subr.mxu0 0.0
  %228 = vmatpush1.msra.mxu0 0.0
  %229 = vmatprep.subr.mxu0 0.0
  %230 = vmatpush1.msra.mxu0 0.0
  %231 = vmatprep.subr.mxu0 0.0
  %232 = vmatpush1.msra.mxu0 0.0
  %233 = vmatprep.subr.mxu0 0.0
  %234 = vmatpush1.msra.mxu0 0.0
  %235 = vmatprep.subr.mxu0 0.0
  %236 = vmatpush1.msra.mxu0 0.0
  %237 = vmatprep.subr.mxu0 0.0
  %238 = vmatpush1.msra.mxu0 0.0
  %239 = vmatprep.subr.mxu0 0.0
  %240 = vmatpush1.msra.mxu0 0.0
  %241 = vmatprep.subr.mxu0 0.0
  %242 = vmatpush1.msra.mxu0 0.0
  %243 = vmatprep.subr.mxu0 0.0
  %244 = vmatpush1.msra.mxu0 0.0
  %245 = vmatprep.subr.mxu0 0.0
  %246 = vmatpush1.msra.mxu0 0.0
  %247 = vmatprep.subr.mxu0 0.0
  %248 = vmatpush1.msra.mxu0 0.0
  %249 = vmatprep.subr.mxu0 0.0
  %250 = vmatpush1.msra.mxu0 0.0
  %251 = vmatprep.subr.mxu0 0.0
  %252 = vmatpush1.msra.mxu0 0.0
  %253 = vmatprep.subr.mxu0 0.0
  %254 = vmatpush1.msra.mxu0 0.0
  %255 = vmatprep.subr.mxu0 0.0
  %256 = vmatpush1.msra.mxu0 0.0
  %257 = vmatprep.subr.mxu0 0.0
  %258 = vmatpush1.msra.mxu0 0.0
  %259 = vmatprep.subr.mxu0 0.0
  %260 = vmatpush1.msra.mxu0 0.0
  %261 = vmatprep.subr.mxu0 0.0
  %262 = vmatpush1.msra.mxu0 0.0
  %263 = vmatprep.subr.mxu0 0.0
  %264 = vmatpush1.msra.mxu0 0.0
  %265 = vmatprep.subr.mxu0 0.0
  %266 = vmatpush1.msra.mxu0 0.0
  %267 = vmatprep.subr.mxu0 0.0
  %268 = vmatpush1.msra.mxu0 0.0
  %269 = vmatprep.subr.mxu0 0.0
  %270 = vmatpush1.msra.mxu0 0.0
  %271 = vmatprep.subr.mxu0 0.0
  %272 = vmatpush1.msra.mxu0 0.0
  %273 = vmatprep.subr.mxu0 0.0
  %274 = vmatpush1.msra.mxu0 0.0
  %275 = vmatprep.subr.mxu0 0.0
  %276 = vmatpush1.msra.mxu0 0.0
  %277 = vmatprep.subr.mxu0 0.0
  %278 = vmatpush1.msra.mxu0 0.0
  %279 = vmatprep.mubr.f32.mxu0 0.0
  %280 = vmatmul.mubr.f32.gmra.mrb[0].mxu0 %v213
  %v281 = vpop.f32.mrb[0].mxu0
  %v282 = vadd.f32 0.0, %v281
  %v283 = vpop.f32.mrb[0].mxu0
  %284 = vdwg.mxu0
  %v285 = vadd.f32 %v117, %v282
  %v286 = vtanh.pop %v285
  %v287 = vmul.f32 %v286, 0.5
  %v288 = vadd.f32 %v287, 0.5
  %v289 = vmul.f32 %v288, 0.0
  %291 = vrot.lane.b32.xlu0 %v286, 64
  %v292 = vpop.permute.xlu0 %291
  %v294 = vmul.f32 %v288, %v292
  %296 = vrot.lane.b32.xlu0 %v294, 32
  %v297 = vpop.permute.xlu0 %296
  %v299 = vadd.f32 %v289, %v297
  %v300 = vtanh.pop %v299
  %302 = vrot.lane.b32.xlu0 %v300, 64
  %v303 = vpop.permute.xlu0 %302
  %v305 = vmul.f32 %v288, %v303
  %307 = vrot.lane.b32.xlu0 %v305, 32
  %v308 = vpop.permute.xlu0 %307
  %v309 = vsel %vm211, %v308, 0
  %311 = vmatprep.subr.mxu0 0.0
  %312 = vmatpush1.msra.mxu0 %v16
  %313 = vmatprep.subr.mxu0 0.0
  %314 = vmatpush1.msra.mxu0 %v17
  %315 = vmatprep.subr.mxu0 0.0
  %316 = vmatpush1.msra.mxu0 %v18
  %317 = vmatprep.subr.mxu0 0.0
  %318 = vmatpush1.msra.mxu0 %v19
  %319 = vmatprep.subr.mxu0 0.0
  %320 = vmatpush1.msra.mxu0 0.0
  %321 = vmatprep.subr.mxu0 0.0
  %322 = vmatpush1.msra.mxu0 0.0
  %323 = vmatprep.subr.mxu0 0.0
  %324 = vmatpush1.msra.mxu0 0.0
  %325 = vmatprep.subr.mxu0 0.0
  %326 = vmatpush1.msra.mxu0 0.0
  %327 = vmatprep.subr.mxu0 0.0
  %328 = vmatpush1.msra.mxu0 0.0
  %329 = vmatprep.subr.mxu0 0.0
  %330 = vmatpush1.msra.mxu0 0.0
  %331 = vmatprep.subr.mxu0 0.0
  %332 = vmatpush1.msra.mxu0 0.0
  %333 = vmatprep.subr.mxu0 0.0
  %334 = vmatpush1.msra.mxu0 0.0
  %335 = vmatprep.subr.mxu0 0.0
  %336 = vmatpush1.msra.mxu0 0.0
  %337 = vmatprep.subr.mxu0 0.0
  %338 = vmatpush1.msra.mxu0 0.0
  %339 = vmatprep.subr.mxu0 0.0
  %340 = vmatpush1.msra.mxu0 0.0
  %341 = vmatprep.subr.mxu0 0.0
  %342 = vmatpush1.msra.mxu0 0.0
  %343 = vmatprep.subr.mxu0 0.0
  %344 = vmatpush1.msra.mxu0 0.0
  %345 = vmatprep.subr.mxu0 0.0
  %346 = vmatpush1.msra.mxu0 0.0
  %347 = vmatprep.subr.mxu0 0.0
  %348 = vmatpush1.msra.mxu0 0.0
  %349 = vmatprep.subr.mxu0 0.0
  %350 = vmatpush1.msra.mxu0 0.0
  %351 = vmatprep.subr.mxu0 0.0
  %352 = vmatpush1.msra.mxu0 0.0
  %353 = vmatprep.subr.mxu0 0.0
  %354 = vmatpush1.msra.mxu0 0.0
  %355 = vmatprep.subr.mxu0 0.0
  %356 = vmatpush1.msra.mxu0 0.0
  %357 = vmatprep.subr.mxu0 0.0
  %358 = vmatpush1.msra.mxu0 0.0
  %359 = vmatprep.subr.mxu0 0.0
  %360 = vmatpush1.msra.mxu0 0.0
  %361 = vmatprep.subr.mxu0 0.0
  %362 = vmatpush1.msra.mxu0 0.0
  %363 = vmatprep.subr.mxu0 0.0
  %364 = vmatpush1.msra.mxu0 0.0
  %365 = vmatprep.subr.mxu0 0.0
  %366 = vmatpush1.msra.mxu0 0.0
  %367 = vmatprep.subr.mxu0 0.0
  %368 = vmatpush1.msra.mxu0 0.0
  %369 = vmatprep.subr.mxu0 0.0
  %370 = vmatpush1.msra.mxu0 0.0
  %371 = vmatprep.subr.mxu0 0.0
  %372 = vmatpush1.msra.mxu0 0.0
  %373 = vmatprep.subr.mxu0 0.0
  %374 = vmatpush1.msra.mxu0 0.0
  %375 = vmatprep.mubr.f32.mxu0 0.0
  %376 = vmatmul.mubr.f32.gmra.mrb[0].mxu0 %v309
  %v377 = vpop.f32.mrb[0].mxu0
  %v378 = vadd.f32 0.0, %v377
  %v379 = vpop.f32.mrb[0].mxu0
  %380 = vdwg.mxu0
  %v382 = vrot.slane %v378, 6
  %v384 = vadd.f32 %v117, %v382
  %v385 = vtanh.pop %v384
  %v386 = vmul.f32 %v385, 0.5
  %v387 = vadd.f32 %v386, 0.5
  %v389 = vrot.slane %v299, 6
  %v391 = vmul.f32 %v387, %v389
  %393 = vrot.lane.b32.xlu0 %v385, 64
  %v394 = vpop.permute.xlu0 %393
  %v396 = vmul.f32 %v387, %v394
  %398 = vrot.lane.b32.xlu0 %v396, 32
  %v399 = vpop.permute.xlu0 %398
  %v401 = vadd.f32 %v391, %v399
  %v402 = vtanh.pop %v401
  %404 = vrot.lane.b32.xlu0 %v402, 64
  %v405 = vpop.permute.xlu0 %404
  %v407 = vmul.f32 %v387, %v405
  %v409 = vrot.slane %v407, 2
  %410 = vrot.lane.b32.xlu0 %v409, 32
  %v411 = vpop.permute.xlu0 %410
  %v412 = vsel %vm211, %v411, 0
  %414 = vmatprep.subr.mxu0 0.0
  %415 = vmatpush1.msra.mxu0 %v16
  %416 = vmatprep.subr.mxu0 0.0
  %417 = vmatpush1.msra.mxu0 %v17
  %418 = vmatprep.subr.mxu0 0.0
  %419 = vmatpush1.msra.mxu0 %v18
  %420 = vmatprep.subr.mxu0 0.0
  %421 = vmatpush1.msra.mxu0 %v19
  %422 = vmatprep.subr.mxu0 0.0
  %423 = vmatpush1.msra.mxu0 0.0
  %424 = vmatprep.subr.mxu0 0.0
  %425 = vmatpush1.msra.mxu0 0.0
  %426 = vmatprep.subr.mxu0 0.0
  %427 = vmatpush1.msra.mxu0 0.0
  %428 = vmatprep.subr.mxu0 0.0
  %429 = vmatpush1.msra.mxu0 0.0
  %430 = vmatprep.subr.mxu0 0.0
  %431 = vmatpush1.msra.mxu0 0.0
  %432 = vmatprep.subr.mxu0 0.0
  %433 = vmatpush1.msra.mxu0 0.0
  %434 = vmatprep.subr.mxu0 0.0
  %435 = vmatpush1.msra.mxu0 0.0
  %436 = vmatprep.subr.mxu0 0.0
  %437 = vmatpush1.msra.mxu0 0.0
  %438 = vmatprep.subr.mxu0 0.0
  %439 = vmatpush1.msra.mxu0 0.0
  %440 = vmatprep.subr.mxu0 0.0
  %441 = vmatpush1.msra.mxu0 0.0
  %442 = vmatprep.subr.mxu0 0.0
  %443 = vmatpush1.msra.mxu0 0.0
  %444 = vmatprep.subr.mxu0 0.0
  %445 = vmatpush1.msra.mxu0 0.0
  %446 = vmatprep.subr.mxu0 0.0
  %447 = vmatpush1.msra.mxu0 0.0
  %448 = vmatprep.subr.mxu0 0.0
  %449 = vmatpush1.msra.mxu0 0.0
  %450 = vmatprep.subr.mxu0 0.0
  %451 = vmatpush1.msra.mxu0 0.0
  %452 = vmatprep.subr.mxu0 0.0
  %453 = vmatpush1.msra.mxu0 0.0
  %454 = vmatprep.subr.mxu0 0.0
  %455 = vmatpush1.msra.mxu0 0.0
  %456 = vmatprep.subr.mxu0 0.0
  %457 = vmatpush1.msra.mxu0 0.0
  %458 = vmatprep.subr.mxu0 0.0
  %459 = vmatpush1.msra.mxu0 0.0
  %460 = vmatprep.subr.mxu0 0.0
  %461 = vmatpush1.msra.mxu0 0.0
  %462 = vmatprep.subr.mxu0 0.0
  %463 = vmatpush1.msra.mxu0 0.0
  %464 = vmatprep.subr.mxu0 0.0
  %465 = vmatpush1.msra.mxu0 0.0
  %466 = vmatprep.subr.mxu0 0.0
  %467 = vmatpush1.msra.mxu0 0.0
  %468 = vmatprep.subr.mxu0 0.0
  %469 = vmatpush1.msra.mxu0 0.0
  %470 = vmatprep.subr.mxu0 0.0
  %471 = vmatpush1.msra.mxu0 0.0
  %472 = vmatprep.subr.mxu0 0.0
  %473 = vmatpush1.msra.mxu0 0.0
  %474 = vmatprep.subr.mxu0 0.0
  %475 = vmatpush1.msra.mxu0 0.0
  %476 = vmatprep.subr.mxu0 0.0
  %477 = vmatpush1.msra.mxu0 0.0
  %478 = vmatprep.mubr.f32.mxu0 0.0
  %479 = vmatmul.mubr.f32.gmra.mrb[0].mxu0 %v412
  %v480 = vpop.f32.mrb[0].mxu0
  %v481 = vadd.f32 0.0, %v480
  %v482 = vpop.f32.mrb[0].mxu0
  %483 = vdwg.mxu0
  %v485 = vrot.slane %v481, 4
  %v487 = vadd.f32 %v117, %v485
  %v488 = vtanh.pop %v487
  %v489 = vmul.f32 %v488, 0.5
  %v490 = vadd.f32 %v489, 0.5
  %v492 = vrot.slane %v401, 6
  %v494 = vmul.f32 %v490, %v492
  %496 = vrot.lane.b32.xlu0 %v488, 64
  %v497 = vpop.permute.xlu0 %496
  %v499 = vmul.f32 %v490, %v497
  %501 = vrot.lane.b32.xlu0 %v499, 32
  %v502 = vpop.permute.xlu0 %501
  %v504 = vadd.f32 %v494, %v502
  %v505 = vtanh.pop %v504
  %507 = vrot.lane.b32.xlu0 %v505, 64
  %v508 = vpop.permute.xlu0 %507
  %v510 = vmul.f32 %v490, %v508
  %v512 = vrot.slane %v510, 4
  %513 = vrot.lane.b32.xlu0 %v512, 32
  %v514 = vpop.permute.xlu0 %513
  %v515 = vsel %vm211, %v514, 0
  %517 = vmatprep.subr.mxu0 0.0
  %518 = vmatpush1.msra.mxu0 %v16
  %519 = vmatprep.subr.mxu0 0.0
  %520 = vmatpush1.msra.mxu0 %v17
  %521 = vmatprep.subr.mxu0 0.0
  %522 = vmatpush1.msra.mxu0 %v18
  %523 = vmatprep.subr.mxu0 0.0
  %524 = vmatpush1.msra.mxu0 %v19
  %525 = vmatprep.subr.mxu0 0.0
  %526 = vmatpush1.msra.mxu0 0.0
  %527 = vmatprep.subr.mxu0 0.0
  %528 = vmatpush1.msra.mxu0 0.0
  %529 = vmatprep.subr.mxu0 0.0
  %530 = vmatpush1.msra.mxu0 0.0
  %531 = vmatprep.subr.mxu0 0.0
  %532 = vmatpush1.msra.mxu0 0.0
  %533 = vmatprep.subr.mxu0 0.0
  %534 = vmatpush1.msra.mxu0 0.0
  %535 = vmatprep.subr.mxu0 0.0
  %536 = vmatpush1.msra.mxu0 0.0
  %537 = vmatprep.subr.mxu0 0.0
  %538 = vmatpush1.msra.mxu0 0.0
  %539 = vmatprep.subr.mxu0 0.0
  %540 = vmatpush1.msra.mxu0 0.0
  %541 = vmatprep.subr.mxu0 0.0
  %542 = vmatpush1.msra.mxu0 0.0
  %543 = vmatprep.subr.mxu0 0.0
  %544 = vmatpush1.msra.mxu0 0.0
  %545 = vmatprep.subr.mxu0 0.0
  %546 = vmatpush1.msra.mxu0 0.0
  %547 = vmatprep.subr.mxu0 0.0
  %548 = vmatpush1.msra.mxu0 0.0
  %549 = vmatprep.subr.mxu0 0.0
  %550 = vmatpush1.msra.mxu0 0.0
  %551 = vmatprep.subr.mxu0 0.0
  %552 = vmatpush1.msra.mxu0 0.0
  %553 = vmatprep.subr.mxu0 0.0
  %554 = vmatpush1.msra.mxu0 0.0
  %555 = vmatprep.subr.mxu0 0.0
  %556 = vmatpush1.msra.mxu0 0.0
  %557 = vmatprep.subr.mxu0 0.0
  %558 = vmatpush1.msra.mxu0 0.0
  %559 = vmatprep.subr.mxu0 0.0
  %560 = vmatpush1.msra.mxu0 0.0
  %561 = vmatprep.subr.mxu0 0.0
  %562 = vmatpush1.msra.mxu0 0.0
  %563 = vmatprep.subr.mxu0 0.0
  %564 = vmatpush1.msra.mxu0 0.0
  %565 = vmatprep.subr.mxu0 0.0
  %566 = vmatpush1.msra.mxu0 0.0
  %567 = vmatprep.subr.mxu0 0.0
  %568 = vmatpush1.msra.mxu0 0.0
  %569 = vmatprep.subr.mxu0 0.0
  %570 = vmatpush1.msra.mxu0 0.0
  %571 = vmatprep.subr.mxu0 0.0
  %572 = vmatpush1.msra.mxu0 0.0
  %573 = vmatprep.subr.mxu0 0.0
  %574 = vmatpush1.msra.mxu0 0.0
  %575 = vmatprep.subr.mxu0 0.0
  %576 = vmatpush1.msra.mxu0 0.0
  %577 = vmatprep.subr.mxu0 0.0
  %578 = vmatpush1.msra.mxu0 0.0
  %579 = vmatprep.subr.mxu0 0.0
  %580 = vmatpush1.msra.mxu0 0.0
  %581 = vmatprep.mubr.f32.mxu0 0.0
  %582 = vmatmul.mubr.f32.gmra.mrb[0].mxu0 %v515
  %v583 = vpop.f32.mrb[0].mxu0
  %v584 = vadd.f32 0.0, %v583
  %v585 = vpop.f32.mrb[0].mxu0
  %586 = vdwg.mxu0
  %v588 = vrot.slane %v584, 2
  %v590 = vadd.f32 %v117, %v588
  %v591 = vtanh.pop %v590
  %v592 = vmul.f32 %v591, 0.5
  %v593 = vadd.f32 %v592, 0.5
  %v595 = vrot.slane %v504, 6
  %v597 = vmul.f32 %v593, %v595
  %599 = vrot.lane.b32.xlu0 %v591, 64
  %v600 = vpop.permute.xlu0 %599
  %v602 = vmul.f32 %v593, %v600
  %604 = vrot.lane.b32.xlu0 %v602, 32
  %v605 = vpop.permute.xlu0 %604
  %v607 = vadd.f32 %v597, %v605
  %v608 = vtanh.pop %v607
  %610 = vrot.lane.b32.xlu0 %v608, 64
  %v611 = vpop.permute.xlu0 %610
  %v613 = vmul.f32 %v593, %v611
  %v615 = vrot.slane %v613, 6
  %616 = vrot.lane.b32.xlu0 %v615, 32
  %v617 = vpop.permute.xlu0 %616
  %v618 = vsel %vm211, %v617, 0
  %620 = vmatprep.subr.mxu0 0.0
  %621 = vmatpush1.msra.mxu0 %v16
  %622 = vmatprep.subr.mxu0 0.0
  %623 = vmatpush1.msra.mxu0 %v17
  %624 = vmatprep.subr.mxu0 0.0
  %625 = vmatpush1.msra.mxu0 %v18
  %626 = vmatprep.subr.mxu0 0.0
  %627 = vmatpush1.msra.mxu0 %v19
  %628 = vmatprep.subr.mxu0 0.0
  %629 = vmatpush1.msra.mxu0 0.0
  %630 = vmatprep.subr.mxu0 0.0
  %631 = vmatpush1.msra.mxu0 0.0
  %632 = vmatprep.subr.mxu0 0.0
  %633 = vmatpush1.msra.mxu0 0.0
  %634 = vmatprep.subr.mxu0 0.0
  %635 = vmatpush1.msra.mxu0 0.0
  %636 = vmatprep.subr.mxu0 0.0
  %637 = vmatpush1.msra.mxu0 0.0
  %638 = vmatprep.subr.mxu0 0.0
  %639 = vmatpush1.msra.mxu0 0.0
  %640 = vmatprep.subr.mxu0 0.0
  %641 = vmatpush1.msra.mxu0 0.0
  %642 = vmatprep.subr.mxu0 0.0
  %643 = vmatpush1.msra.mxu0 0.0
  %644 = vmatprep.subr.mxu0 0.0
  %645 = vmatpush1.msra.mxu0 0.0
  %646 = vmatprep.subr.mxu0 0.0
  %647 = vmatpush1.msra.mxu0 0.0
  %648 = vmatprep.subr.mxu0 0.0
  %649 = vmatpush1.msra.mxu0 0.0
  %650 = vmatprep.subr.mxu0 0.0
  %651 = vmatpush1.msra.mxu0 0.0
  %652 = vmatprep.subr.mxu0 0.0
  %653 = vmatpush1.msra.mxu0 0.0
  %654 = vmatprep.subr.mxu0 0.0
  %655 = vmatpush1.msra.mxu0 0.0
  %656 = vmatprep.subr.mxu0 0.0
  %657 = vmatpush1.msra.mxu0 0.0
  %658 = vmatprep.subr.mxu0 0.0
  %659 = vmatpush1.msra.mxu0 0.0
  %660 = vmatprep.subr.mxu0 0.0
  %661 = vmatpush1.msra.mxu0 0.0
  %662 = vmatprep.subr.mxu0 0.0
  %663 = vmatpush1.msra.mxu0 0.0
  %664 = vmatprep.subr.mxu0 0.0
  %665 = vmatpush1.msra.mxu0 0.0
  %666 = vmatprep.subr.mxu0 0.0
  %667 = vmatpush1.msra.mxu0 0.0
  %668 = vmatprep.subr.mxu0 0.0
  %669 = vmatpush1.msra.mxu0 0.0
  %670 = vmatprep.subr.mxu0 0.0
  %671 = vmatpush1.msra.mxu0 0.0
  %672 = vmatprep.subr.mxu0 0.0
  %673 = vmatpush1.msra.mxu0 0.0
  %674 = vmatprep.subr.mxu0 0.0
  %675 = vmatpush1.msra.mxu0 0.0
  %676 = vmatprep.subr.mxu0 0.0
  %677 = vmatpush1.msra.mxu0 0.0
  %678 = vmatprep.subr.mxu0 0.0
  %679 = vmatpush1.msra.mxu0 0.0
  %680 = vmatprep.subr.mxu0 0.0
  %681 = vmatpush1.msra.mxu0 0.0
  %682 = vmatprep.subr.mxu0 0.0
  %683 = vmatpush1.msra.mxu0 0.0
  %684 = vmatprep.mubr.f32.mxu0 0.0
  %685 = vmatmul.mubr.f32.gmra.mrb[0].mxu0 %v618
  %v686 = vpop.f32.mrb[0].mxu0
  %v687 = vadd.f32 0.0, %v686
  %v688 = vpop.f32.mrb[0].mxu0
  %689 = vdwg.mxu0
  %v690 = vadd.f32 %v122, %v687
  %v691 = vtanh.pop %v690
  %v692 = vmul.f32 %v691, 0.5
  %v693 = vadd.f32 %v692, 0.5
  %v695 = vrot.slane %v607, 6
  %v697 = vmul.f32 %v693, %v695
  %699 = vrot.lane.b32.xlu0 %v691, 64
  %v700 = vpop.permute.xlu0 %699
  %v702 = vmul.f32 %v693, %v700
  %704 = vrot.lane.b32.xlu0 %v702, 32
  %v705 = vpop.permute.xlu0 %704
  %v707 = vadd.f32 %v697, %v705
  %v708 = vtanh.pop %v707
  %710 = vrot.lane.b32.xlu0 %v708, 64
  %v711 = vpop.permute.xlu0 %710
  %v713 = vmul.f32 %v693, %v711
  %715 = vrot.lane.b32.xlu0 %v713, 32
  %v716 = vpop.permute.xlu0 %715
  %v717 = vsel %vm211, %v716, 0
  %719 = vmatprep.subr.mxu0 0.0
  %720 = vmatpush1.msra.mxu0 %v16
  %721 = vmatprep.subr.mxu0 0.0
  %722 = vmatpush1.msra.mxu0 %v17
  %723 = vmatprep.subr.mxu0 0.0
  %724 = vmatpush1.msra.mxu0 %v18
  %725 = vmatprep.subr.mxu0 0.0
  %726 = vmatpush1.msra.mxu0 %v19
  %727 = vmatprep.subr.mxu0 0.0
  %728 = vmatpush1.msra.mxu0 0.0
  %729 = vmatprep.subr.mxu0 0.0
  %730 = vmatpush1.msra.mxu0 0.0
  %731 = vmatprep.subr.mxu0 0.0
  %732 = vmatpush1.msra.mxu0 0.0
  %733 = vmatprep.subr.mxu0 0.0
  %734 = vmatpush1.msra.mxu0 0.0
  %735 = vmatprep.subr.mxu0 0.0
  %736 = vmatpush1.msra.mxu0 0.0
  %737 = vmatprep.subr.mxu0 0.0
  %738 = vmatpush1.msra.mxu0 0.0
  %739 = vmatprep.subr.mxu0 0.0
  %740 = vmatpush1.msra.mxu0 0.0
  %741 = vmatprep.subr.mxu0 0.0
  %742 = vmatpush1.msra.mxu0 0.0
  %743 = vmatprep.subr.mxu0 0.0
  %744 = vmatpush1.msra.mxu0 0.0
  %745 = vmatprep.subr.mxu0 0.0
  %746 = vmatpush1.msra.mxu0 0.0
  %747 = vmatprep.subr.mxu0 0.0
  %748 = vmatpush1.msra.mxu0 0.0
  %749 = vmatprep.subr.mxu0 0.0
  %750 = vmatpush1.msra.mxu0 0.0
  %751 = vmatprep.subr.mxu0 0.0
  %752 = vmatpush1.msra.mxu0 0.0
  %753 = vmatprep.subr.mxu0 0.0
  %754 = vmatpush1.msra.mxu0 0.0
  %755 = vmatprep.subr.mxu0 0.0
  %756 = vmatpush1.msra.mxu0 0.0
  %757 = vmatprep.subr.mxu0 0.0
  %758 = vmatpush1.msra.mxu0 0.0
  %759 = vmatprep.subr.mxu0 0.0
  %760 = vmatpush1.msra.mxu0 0.0
  %761 = vmatprep.subr.mxu0 0.0
  %762 = vmatpush1.msra.mxu0 0.0
  %763 = vmatprep.subr.mxu0 0.0
  %764 = vmatpush1.msra.mxu0 0.0
  %765 = vmatprep.subr.mxu0 0.0
  %766 = vmatpush1.msra.mxu0 0.0
  %767 = vmatprep.subr.mxu0 0.0
  %768 = vmatpush1.msra.mxu0 0.0
  %769 = vmatprep.subr.mxu0 0.0
  %770 = vmatpush1.msra.mxu0 0.0
  %771 = vmatprep.subr.mxu0 0.0
  %772 = vmatpush1.msra.mxu0 0.0
  %773 = vmatprep.subr.mxu0 0.0
  %774 = vmatpush1.msra.mxu0 0.0
  %775 = vmatprep.subr.mxu0 0.0
  %776 = vmatpush1.msra.mxu0 0.0
  %777 = vmatprep.subr.mxu0 0.0
  %778 = vmatpush1.msra.mxu0 0.0
  %779 = vmatprep.subr.mxu0 0.0
  %780 = vmatpush1.msra.mxu0 0.0
  %781 = vmatprep.subr.mxu0 0.0
  %782 = vmatpush1.msra.mxu0 0.0
  %783 = vmatprep.mubr.f32.mxu0 0.0
  %784 = vmatmul.mubr.f32.gmra.mrb[0].mxu0 %v717
  %v785 = vpop.f32.mrb[0].mxu0
  %v786 = vadd.f32 0.0, %v785
  %v787 = vpop.f32.mrb[0].mxu0
  %788 = vdwg.mxu0
  %v790 = vrot.slane %v786, 6
  %v792 = vadd.f32 %v122, %v790
  %v793 = vtanh.pop %v792
  %v794 = vmul.f32 %v793, 0.5
  %v795 = vadd.f32 %v794, 0.5
  %v797 = vrot.slane %v707, 6
  %v799 = vmul.f32 %v795, %v797
  %801 = vrot.lane.b32.xlu0 %v793, 64
  %v802 = vpop.permute.xlu0 %801
  %v804 = vmul.f32 %v795, %v802
  %806 = vrot.lane.b32.xlu0 %v804, 32
  %v807 = vpop.permute.xlu0 %806
  %v809 = vadd.f32 %v799, %v807
  %v810 = vtanh.pop %v809
  %812 = vrot.lane.b32.xlu0 %v810, 64
  %v813 = vpop.permute.xlu0 %812
  %v815 = vmul.f32 %v795, %v813
  %v817 = vrot.slane %v815, 2
  %818 = vrot.lane.b32.xlu0 %v817, 32
  %v819 = vpop.permute.xlu0 %818
  %v820 = vsel %vm211, %v819, 0
  %822 = vmatprep.subr.mxu0 0.0
  %823 = vmatpush1.msra.mxu0 %v16
  %824 = vmatprep.subr.mxu0 0.0
  %825 = vmatpush1.msra.mxu0 %v17
  %826 = vmatprep.subr.mxu0 0.0
  %827 = vmatpush1.msra.mxu0 %v18
  %828 = vmatprep.subr.mxu0 0.0
  %829 = vmatpush1.msra.mxu0 %v19
  %830 = vmatprep.subr.mxu0 0.0
  %831 = vmatpush1.msra.mxu0 0.0
  %832 = vmatprep.subr.mxu0 0.0
  %833 = vmatpush1.msra.mxu0 0.0
  %834 = vmatprep.subr.mxu0 0.0
  %835 = vmatpush1.msra.mxu0 0.0
  %836 = vmatprep.subr.mxu0 0.0
  %837 = vmatpush1.msra.mxu0 0.0
  %838 = vmatprep.subr.mxu0 0.0
  %839 = vmatpush1.msra.mxu0 0.0
  %840 = vmatprep.subr.mxu0 0.0
  %841 = vmatpush1.msra.mxu0 0.0
  %842 = vmatprep.subr.mxu0 0.0
  %843 = vmatpush1.msra.mxu0 0.0
  %844 = vmatprep.subr.mxu0 0.0
  %845 = vmatpush1.msra.mxu0 0.0
  %846 = vmatprep.subr.mxu0 0.0
  %847 = vmatpush1.msra.mxu0 0.0
  %848 = vmatprep.subr.mxu0 0.0
  %849 = vmatpush1.msra.mxu0 0.0
  %850 = vmatprep.subr.mxu0 0.0
  %851 = vmatpush1.msra.mxu0 0.0
  %852 = vmatprep.subr.mxu0 0.0
  %853 = vmatpush1.msra.mxu0 0.0
  %854 = vmatprep.subr.mxu0 0.0
  %855 = vmatpush1.msra.mxu0 0.0
  %856 = vmatprep.subr.mxu0 0.0
  %857 = vmatpush1.msra.mxu0 0.0
  %858 = vmatprep.subr.mxu0 0.0
  %859 = vmatpush1.msra.mxu0 0.0
  %860 = vmatprep.subr.mxu0 0.0
  %861 = vmatpush1.msra.mxu0 0.0
  %862 = vmatprep.subr.mxu0 0.0
  %863 = vmatpush1.msra.mxu0 0.0
  %864 = vmatprep.subr.mxu0 0.0
  %865 = vmatpush1.msra.mxu0 0.0
  %866 = vmatprep.subr.mxu0 0.0
  %867 = vmatpush1.msra.mxu0 0.0
  %868 = vmatprep.subr.mxu0 0.0
  %869 = vmatpush1.msra.mxu0 0.0
  %870 = vmatprep.subr.mxu0 0.0
  %871 = vmatpush1.msra.mxu0 0.0
  %872 = vmatprep.subr.mxu0 0.0
  %873 = vmatpush1.msra.mxu0 0.0
  %874 = vmatprep.subr.mxu0 0.0
  %875 = vmatpush1.msra.mxu0 0.0
  %876 = vmatprep.subr.mxu0 0.0
  %877 = vmatpush1.msra.mxu0 0.0
  %878 = vmatprep.subr.mxu0 0.0
  %879 = vmatpush1.msra.mxu0 0.0
  %880 = vmatprep.subr.mxu0 0.0
  %881 = vmatpush1.msra.mxu0 0.0
  %882 = vmatprep.subr.mxu0 0.0
  %883 = vmatpush1.msra.mxu0 0.0
  %884 = vmatprep.subr.mxu0 0.0
  %885 = vmatpush1.msra.mxu0 0.0
  %886 = vmatprep.mubr.f32.mxu0 0.0
  %887 = vmatmul.mubr.f32.gmra.mrb[0].mxu0 %v820
  %v888 = vpop.f32.mrb[0].mxu0
  %v889 = vadd.f32 0.0, %v888
  %v890 = vpop.f32.mrb[0].mxu0
  %891 = vdwg.mxu0
  %v893 = vrot.slane %v889, 4
  %v895 = vadd.f32 %v122, %v893
  %v896 = vtanh.pop %v895
  %v897 = vmul.f32 %v896, 0.5
  %v898 = vadd.f32 %v897, 0.5
  %v900 = vrot.slane %v809, 6
  %v902 = vmul.f32 %v898, %v900
  %904 = vrot.lane.b32.xlu0 %v896, 64
  %v905 = vpop.permute.xlu0 %904
  %v907 = vmul.f32 %v898, %v905
  %909 = vrot.lane.b32.xlu0 %v907, 32
  %v910 = vpop.permute.xlu0 %909
  %v912 = vadd.f32 %v902, %v910
  %v913 = vtanh.pop %v912
  %915 = vrot.lane.b32.xlu0 %v913, 64
  %v916 = vpop.permute.xlu0 %915
  %v918 = vmul.f32 %v898, %v916
  %v920 = vrot.slane %v918, 4
  %921 = vrot.lane.b32.xlu0 %v920, 32
  %v922 = vpop.permute.xlu0 %921
  %v923 = vsel %vm211, %v922, 0
  %925 = vmatprep.subr.mxu0 0.0
  %926 = vmatpush1.msra.mxu0 %v16
  %927 = vmatprep.subr.mxu0 0.0
  %928 = vmatpush1.msra.mxu0 %v17
  %929 = vmatprep.subr.mxu0 0.0
  %930 = vmatpush1.msra.mxu0 %v18
  %931 = vmatprep.subr.mxu0 0.0
  %932 = vmatpush1.msra.mxu0 %v19
  %933 = vmatprep.subr.mxu0 0.0
  %934 = vmatpush1.msra.mxu0 0.0
  %935 = vmatprep.subr.mxu0 0.0
  %936 = vmatpush1.msra.mxu0 0.0
  %937 = vmatprep.subr.mxu0 0.0
  %938 = vmatpush1.msra.mxu0 0.0
  %939 = vmatprep.subr.mxu0 0.0
  %940 = vmatpush1.msra.mxu0 0.0
  %941 = vmatprep.subr.mxu0 0.0
  %942 = vmatpush1.msra.mxu0 0.0
  %943 = vmatprep.subr.mxu0 0.0
  %944 = vmatpush1.msra.mxu0 0.0
  %945 = vmatprep.subr.mxu0 0.0
  %946 = vmatpush1.msra.mxu0 0.0
  %947 = vmatprep.subr.mxu0 0.0
  %948 = vmatpush1.msra.mxu0 0.0
  %949 = vmatprep.subr.mxu0 0.0
  %950 = vmatpush1.msra.mxu0 0.0
  %951 = vmatprep.subr.mxu0 0.0
  %952 = vmatpush1.msra.mxu0 0.0
  %953 = vmatprep.subr.mxu0 0.0
  %954 = vmatpush1.msra.mxu0 0.0
  %955 = vmatprep.subr.mxu0 0.0
  %956 = vmatpush1.msra.mxu0 0.0
  %957 = vmatprep.subr.mxu0 0.0
  %958 = vmatpush1.msra.mxu0 0.0
  %959 = vmatprep.subr.mxu0 0.0
  %960 = vmatpush1.msra.mxu0 0.0
  %961 = vmatprep.subr.mxu0 0.0
  %962 = vmatpush1.msra.mxu0 0.0
  %963 = vmatprep.subr.mxu0 0.0
  %964 = vmatpush1.msra.mxu0 0.0
  %965 = vmatprep.subr.mxu0 0.0
  %966 = vmatpush1.msra.mxu0 0.0
  %967 = vmatprep.subr.mxu0 0.0
  %968 = vmatpush1.msra.mxu0 0.0
  %969 = vmatprep.subr.mxu0 0.0
  %970 = vmatpush1.msra.mxu0 0.0
  %971 = vmatprep.subr.mxu0 0.0
  %972 = vmatpush1.msra.mxu0 0.0
  %973 = vmatprep.subr.mxu0 0.0
  %974 = vmatpush1.msra.mxu0 0.0
  %975 = vmatprep.subr.mxu0 0.0
  %976 = vmatpush1.msra.mxu0 0.0
  %977 = vmatprep.subr.mxu0 0.0
  %978 = vmatpush1.msra.mxu0 0.0
  %979 = vmatprep.subr.mxu0 0.0
  %980 = vmatpush1.msra.mxu0 0.0
  %981 = vmatprep.subr.mxu0 0.0
  %982 = vmatpush1.msra.mxu0 0.0
  %983 = vmatprep.subr.mxu0 0.0
  %984 = vmatpush1.msra.mxu0 0.0
  %985 = vmatprep.subr.mxu0 0.0
  %986 = vmatpush1.msra.mxu0 0.0
  %987 = vmatprep.subr.mxu0 0.0
  %988 = vmatpush1.msra.mxu0 0.0
  %989 = vmatprep.mubr.f32.mxu0 0.0
  %990 = vmatmul.mubr.f32.gmra.mrb[0].mxu0 %v923
  %v991 = vpop.f32.mrb[0].mxu0
  %v992 = vadd.f32 0.0, %v991
  %v993 = vpop.f32.mrb[0].mxu0
  %994 = vdwg.mxu0
  %v996 = vrot.slane %v992, 2
  %v998 = vadd.f32 %v122, %v996
  %v999 = vtanh.pop %v998
  %v1000 = vmul.f32 %v999, 0.5
  %v1001 = vadd.f32 %v1000, 0.5
  %v1003 = vrot.slane %v912, 6
  %v1005 = vmul.f32 %v1001, %v1003
  %1007 = vrot.lane.b32.xlu0 %v999, 64
  %v1008 = vpop.permute.xlu0 %1007
  %v1010 = vmul.f32 %v1001, %v1008
  %1012 = vrot.lane.b32.xlu0 %v1010, 32
  %v1013 = vpop.permute.xlu0 %1012
  %v1015 = vadd.f32 %v1005, %v1013
  %v1016 = vtanh.pop %v1015
  %1018 = vrot.lane.b32.xlu0 %v1016, 64
  %v1019 = vpop.permute.xlu0 %1018
  %v1021 = vmul.f32 %v1001, %v1019
  %v1022 = vlaneseq
  %v1023 = vand.u32 %v1022, 127
  %v1025 = vrot.slane %v1021, 6
  %1026 = vrot.lane.b32.xlu0 %v1025, 32
  %v1027 = vpop.permute.xlu0 %1026
  %v1028 = vsel %vm211, %v1027, 0
  %1030 = vmatprep.subr.mxu0 %v26
  %1031 = vmatpush1.msra.mxu0 %v25
  %1032 = vmatprep.subr.mxu0 %v28
  %1033 = vmatpush1.msra.mxu0 %v27
  %1034 = vmatprep.subr.mxu0 %v30
  %1035 = vmatpush1.msra.mxu0 %v29
  %1036 = vmatprep.subr.mxu0 %v32
  %1037 = vmatpush1.msra.mxu0 %v31
  %1038 = vmatprep.subr.mxu0 0.0
  %1039 = vmatpush1.msra.mxu0 0.0
  %1040 = vmatprep.subr.mxu0 0.0
  %1041 = vmatpush1.msra.mxu0 0.0
  %1042 = vmatprep.subr.mxu0 0.0
  %1043 = vmatpush1.msra.mxu0 0.0
  %1044 = vmatprep.subr.mxu0 0.0
  %1045 = vmatpush1.msra.mxu0 0.0
  %1046 = vmatprep.subr.mxu0 0.0
  %1047 = vmatpush1.msra.mxu0 0.0
  %1048 = vmatprep.subr.mxu0 0.0
  %1049 = vmatpush1.msra.mxu0 0.0
  %1050 = vmatprep.subr.mxu0 0.0
  %1051 = vmatpush1.msra.mxu0 0.0
  %1052 = vmatprep.subr.mxu0 0.0
  %1053 = vmatpush1.msra.mxu0 0.0
  %1054 = vmatprep.subr.mxu0 0.0
  %1055 = vmatpush1.msra.mxu0 0.0
  %1056 = vmatprep.subr.mxu0 0.0
  %1057 = vmatpush1.msra.mxu0 0.0
  %1058 = vmatprep.subr.mxu0 0.0
  %1059 = vmatpush1.msra.mxu0 0.0
  %1060 = vmatprep.subr.mxu0 0.0
  %1061 = vmatpush1.msra.mxu0 0.0
  %1062 = vmatprep.subr.mxu0 0.0
  %1063 = vmatpush1.msra.mxu0 0.0
  %1064 = vmatprep.subr.mxu0 0.0
  %1065 = vmatpush1.msra.mxu0 0.0
  %1066 = vmatprep.subr.mxu0 0.0
  %1067 = vmatpush1.msra.mxu0 0.0
  %1068 = vmatprep.subr.mxu0 0.0
  %1069 = vmatpush1.msra.mxu0 0.0
  %1070 = vmatprep.subr.mxu0 0.0
  %1071 = vmatpush1.msra.mxu0 0.0
  %1072 = vmatprep.subr.mxu0 0.0
  %1073 = vmatpush1.msra.mxu0 0.0
  %1074 = vmatprep.subr.mxu0 0.0
  %1075 = vmatpush1.msra.mxu0 0.0
  %1076 = vmatprep.subr.mxu0 0.0
  %1077 = vmatpush1.msra.mxu0 0.0
  %1078 = vmatprep.subr.mxu0 0.0
  %1079 = vmatpush1.msra.mxu0 0.0
  %1080 = vmatprep.subr.mxu0 0.0
  %1081 = vmatpush1.msra.mxu0 0.0
  %1082 = vmatprep.subr.mxu0 0.0
  %1083 = vmatpush1.msra.mxu0 0.0
  %1084 = vmatprep.subr.mxu0 0.0
  %1085 = vmatpush1.msra.mxu0 0.0
  %1086 = vmatprep.subr.mxu0 0.0
  %1087 = vmatpush1.msra.mxu0 0.0
  %1088 = vmatprep.subr.mxu0 0.0
  %1089 = vmatpush1.msra.mxu0 0.0
  %1090 = vmatprep.subr.mxu0 0.0
  %1091 = vmatpush1.msra.mxu0 0.0
  %1092 = vmatprep.subr.mxu0 0.0
  %1093 = vmatpush1.msra.mxu0 0.0
  %1094 = vmatprep.mubr.f32.mxu0 0.0
  %1095 = vmatmul.mubr.f32.gmra.mrb[0].mxu0 %v1028
  %v1096 = vpop.f32.mrb[0].mxu0
  %v1097 = vadd.f32 0.0, %v1096
  %v1098 = vpop.f32.mrb[0].mxu0
  %1099 = vdwg.mxu0
  %v1100 = vlaneseq
  %v1101 = vshrl.u32 %v1100, 7
  %v1102 = vsub.s32 0, %v1101
  %v1103 = vrot.slane %v203, %v1102
  %v1104 = vadd.f32 %v1103, %v1097
  %v1105 = vtanh.pop %v1104
  %v1106 = vmul.f32 %v1105, 0.5
  %v1107 = vadd.f32 %v1106, 0.5
  %v1109 = vrot.slane %v1015, 6
  %v1111 = vmul.f32 %v1107, %v1109
  %1113 = vrot.lane.b32.xlu0 %v1105, 64
  %v1114 = vpop.permute.xlu0 %1113
  %v1116 = vmul.f32 %v1107, %v1114
  %1118 = vrot.lane.b32.xlu0 %v1116, 32
  %v1119 = vpop.permute.xlu0 %1118
  %v1121 = vadd.f32 %v1111, %v1119
  %v1122 = vtanh.pop %v1121
  %1124 = vrot.lane.b32.xlu0 %v1122, 64
  %v1125 = vpop.permute.xlu0 %1124
  %v1127 = vmul.f32 %v1107, %v1125
  %1129 = vrot.lane.b32.xlu0 %v1127, 32
  %v1130 = vpop.permute.xlu0 %1129
  %v1131 = vsel %vm211, %v1130, 0
  %1133 = vmatprep.subr.mxu0 %v26
  %1134 = vmatpush1.msra.mxu0 %v25
  %1135 = vmatprep.subr.mxu0 %v28
  %1136 = vmatpush1.msra.mxu0 %v27
  %1137 = vmatprep.subr.mxu0 %v30
  %1138 = vmatpush1.msra.mxu0 %v29
  %1139 = vmatprep.subr.mxu0 %v32
  %1140 = vmatpush1.msra.mxu0 %v31
  %1141 = vmatprep.subr.mxu0 0.0
  %1142 = vmatpush1.msra.mxu0 0.0
  %1143 = vmatprep.subr.mxu0 0.0
  %1144 = vmatpush1.msra.mxu0 0.0
  %1145 = vmatprep.subr.mxu0 0.0
  %1146 = vmatpush1.msra.mxu0 0.0
  %1147 = vmatprep.subr.mxu0 0.0
  %1148 = vmatpush1.msra.mxu0 0.0
  %1149 = vmatprep.subr.mxu0 0.0
  %1150 = vmatpush1.msra.mxu0 0.0
  %1151 = vmatprep.subr.mxu0 0.0
  %1152 = vmatpush1.msra.mxu0 0.0
  %1153 = vmatprep.subr.mxu0 0.0
  %1154 = vmatpush1.msra.mxu0 0.0
  %1155 = vmatprep.subr.mxu0 0.0
  %1156 = vmatpush1.msra.mxu0 0.0
  %1157 = vmatprep.subr.mxu0 0.0
  %1158 = vmatpush1.msra.mxu0 0.0
  %1159 = vmatprep.subr.mxu0 0.0
  %1160 = vmatpush1.msra.mxu0 0.0
  %1161 = vmatprep.subr.mxu0 0.0
  %1162 = vmatpush1.msra.mxu0 0.0
  %1163 = vmatprep.subr.mxu0 0.0
  %1164 = vmatpush1.msra.mxu0 0.0
  %1165 = vmatprep.subr.mxu0 0.0
  %1166 = vmatpush1.msra.mxu0 0.0
  %1167 = vmatprep.subr.mxu0 0.0
  %1168 = vmatpush1.msra.mxu0 0.0
  %1169 = vmatprep.subr.mxu0 0.0
  %1170 = vmatpush1.msra.mxu0 0.0
  %1171 = vmatprep.subr.mxu0 0.0
  %1172 = vmatpush1.msra.mxu0 0.0
  %1173 = vmatprep.subr.mxu0 0.0
  %1174 = vmatpush1.msra.mxu0 0.0
  %1175 = vmatprep.subr.mxu0 0.0
  %1176 = vmatpush1.msra.mxu0 0.0
  %1177 = vmatprep.subr.mxu0 0.0
  %1178 = vmatpush1.msra.mxu0 0.0
  %1179 = vmatprep.subr.mxu0 0.0
  %1180 = vmatpush1.msra.mxu0 0.0
  %1181 = vmatprep.subr.mxu0 0.0
  %1182 = vmatpush1.msra.mxu0 0.0
  %1183 = vmatprep.subr.mxu0 0.0
  %1184 = vmatpush1.msra.mxu0 0.0
  %1185 = vmatprep.subr.mxu0 0.0
  %1186 = vmatpush1.msra.mxu0 0.0
  %1187 = vmatprep.subr.mxu0 0.0
  %1188 = vmatpush1.msra.mxu0 0.0
  %1189 = vmatprep.subr.mxu0 0.0
  %1190 = vmatpush1.msra.mxu0 0.0
  %1191 = vmatprep.subr.mxu0 0.0
  %1192 = vmatpush1.msra.mxu0 0.0
  %1193 = vmatprep.subr.mxu0 0.0
  %1194 = vmatpush1.msra.mxu0 0.0
  %1195 = vmatprep.subr.mxu0 0.0
  %1196 = vmatpush1.msra.mxu0 0.0
  %1197 = vmatprep.mubr.f32.mxu0 0.0
  %1198 = vmatmul.mubr.f32.gmra.mrb[0].mxu0 %v1131
  %v1199 = vpop.f32.mrb[0].mxu0
  %v1200 = vadd.f32 0.0, %v1199
  %v1201 = vpop.f32.mrb[0].mxu0
  %v1202 = vadd.f32 0.0, %v1201
  %1203 = vdwg.mxu0
  %v1204 = vlaneseq
  %v1205 = vshrl.u32 %v1204, 7
  %v1206 = vsub.s32 0, %v1205
  %v1207 = vrot.slane %v24, %v1206
  %v1208 = vadd.f32 %v1202, %v1207
  %vm1209 = vcmask 123904
  %1210 = vst.msk [vmem:[%s3] sm:$0x3] %vm1209, %v1208
  %v1211 = vsel %vm1209, %v1208, -inf
  %1212 = vmax.xlane.f32.xlu0 %v1211
  %v1213 = vpop.xlane.xlu0 %1212
  %vm1214 = vcmp.eq.f32.partialorder %v1208, %v1213
  %v1215 = vsel %vm1214, %v1023, 16
  %v1216 = vsel %vm1209, %v1215, 2147483647
  %v1217 = vand.u32 %v1216, 65535
  %v1218 = vshra.s32 %v1216, 16
  %v1219 = vcvt.s32.f32 %v1217
  %v1220 = vcvt.s32.f32 %v1218
  %1221 = vmin.xlane.f32.xlu0 %v1220
  %v1222 = vpop.xlane.xlu0 %1221
  %vm1223 = vcmp.eq.f32.partialorder %v1220, %v1222
  %v1224 = vsel %vm1223, %v1219, inf
  %1225 = vmin.xlane.f32.xlu0 %v1224
  %v1226 = vpop.xlane.xlu0 %1225
  %v1227 = vcvt.f32.s32 %v1226
  %v1228 = vcvt.f32.s32 %v1222
  %v1229 = vshll.u32 %v1228, 16
  %v1230 = vadd.s32 %v1229, %v1227
  %vm1231 = vcmp.eq.s32.totalorder %v1023, %v1230
  %v1232 = vsel %vm1231, 1, 0
  %v1233 = vcvt.s32.f32 %v1232
  %vm1234 = vcmask 130048
  %v1236 = vsel %vm1234, %v1233, 0
  %1238 = vmatprep.subr.mxu0 0.0
  %1239 = vmatpush1.msra.mxu0 %v203
  %1240 = vmatprep.subr.mxu0 0.0
  %1241 = vmatpush1.msra.mxu0 %v208
  %1242 = vmatprep.subr.mxu0 0.0
  %1243 = vmatpush1.msra.mxu0 0.0
  %1244 = vmatprep.subr.mxu0 0.0
  %1245 = vmatpush1.msra.mxu0 0.0
  %1246 = vmatprep.subr.mxu0 0.0
  %1247 = vmatpush1.msra.mxu0 0.0
  %1248 = vmatprep.subr.mxu0 0.0
  %1249 = vmatpush1.msra.mxu0 0.0
  %1250 = vmatprep.subr.mxu0 0.0
  %1251 = vmatpush1.msra.mxu0 0.0
  %1252 = vmatprep.subr.mxu0 0.0
  %1253 = vmatpush1.msra.mxu0 0.0
  %1254 = vmatprep.subr.mxu0 0.0
  %1255 = vmatpush1.msra.mxu0 0.0
  %1256 = vmatprep.subr.mxu0 0.0
  %1257 = vmatpush1.msra.mxu0 0.0
  %1258 = vmatprep.subr.mxu0 0.0
  %1259 = vmatpush1.msra.mxu0 0.0
  %1260 = vmatprep.subr.mxu0 0.0
  %1261 = vmatpush1.msra.mxu0 0.0
  %1262 = vmatprep.subr.mxu0 0.0
  %1263 = vmatpush1.msra.mxu0 0.0
  %1264 = vmatprep.subr.mxu0 0.0
  %1265 = vmatpush1.msra.mxu0 0.0
  %1266 = vmatprep.subr.mxu0 0.0
  %1267 = vmatpush1.msra.mxu0 0.0
  %1268 = vmatprep.subr.mxu0 0.0
  %1269 = vmatpush1.msra.mxu0 0.0
  %1270 = vmatprep.subr.mxu0 0.0
  %1271 = vmatpush1.msra.mxu0 0.0
  %1272 = vmatprep.subr.mxu0 0.0
  %1273 = vmatpush1.msra.mxu0 0.0
  %1274 = vmatprep.subr.mxu0 0.0
  %1275 = vmatpush1.msra.mxu0 0.0
  %1276 = vmatprep.subr.mxu0 0.0
  %1277 = vmatpush1.msra.mxu0 0.0
  %1278 = vmatprep.subr.mxu0 0.0
  %1279 = vmatpush1.msra.mxu0 0.0
  %1280 = vmatprep.subr.mxu0 0.0
  %1281 = vmatpush1.msra.mxu0 0.0
  %1282 = vmatprep.subr.mxu0 0.0
  %1283 = vmatpush1.msra.mxu0 0.0
  %1284 = vmatprep.subr.mxu0 0.0
  %1285 = vmatpush1.msra.mxu0 0.0
  %1286 = vmatprep.subr.mxu0 0.0
  %1287 = vmatpush1.msra.mxu0 0.0
  %1288 = vmatprep.subr.mxu0 0.0
  %1289 = vmatpush1.msra.mxu0 0.0
  %1290 = vmatprep.subr.mxu0 0.0
  %1291 = vmatpush1.msra.mxu0 0.0
  %1292 = vmatprep.subr.mxu0 0.0
  %1293 = vmatpush1.msra.mxu0 0.0
  %1294 = vmatprep.subr.mxu0 0.0
  %1295 = vmatpush1.msra.mxu0 0.0
  %1296 = vmatprep.subr.mxu0 0.0
  %1297 = vmatpush1.msra.mxu0 0.0
  %1298 = vmatprep.subr.mxu0 0.0
  %1299 = vmatpush1.msra.mxu0 0.0
  %1300 = vmatprep.subr.mxu0 0.0
  %1301 = vmatpush1.msra.mxu0 0.0
  %1302 = vmatprep.mubr.f32.mxu0 0.0
  %1303 = vmatmul.mubr.f32.gmra.mrb[0].mxu0 %v1236
  %v1304 = vpop.f32.mrb[0].mxu0
  %v1305 = vadd.f32 %v1200, %v1304
  %v1306 = vpop.f32.mrb[0].mxu0
  %1307 = vdwg.mxu0
  %v1308 = vtanh.pop %v1305
  %v1309 = vmul.f32 %v1308, 0.5
  %v1310 = vadd.f32 %v1309, 0.5
  %v1311 = vmul.f32 %v1310, %v1121
  %1313 = vrot.lane.b32.xlu0 %v1308, 64
  %v1314 = vpop.permute.xlu0 %1313
  %v1316 = vmul.f32 %v1310, %v1314
  %1318 = vrot.lane.b32.xlu0 %v1316, 32
  %v1319 = vpop.permute.xlu0 %1318
  %v1321 = vadd.f32 %v1311, %v1319
  %v1322 = vtanh.pop %v1321
  %1324 = vrot.lane.b32.xlu0 %v1322, 64
  %v1325 = vpop.permute.xlu0 %1324
  %v1327 = vmul.f32 %v1310, %v1325
  %1329 = vrot.lane.b32.xlu0 %v1327, 32
  %v1330 = vpop.permute.xlu0 %1329
  %v1331 = vsel %vm211, %v1330, 0
  %1333 = vmatprep.subr.mxu0 %v26
  %1334 = vmatpush1.msra.mxu0 %v25
  %1335 = vmatprep.subr.mxu0 %v28
  %1336 = vmatpush1.msra.mxu0 %v27
  %1337 = vmatprep.subr.mxu0 %v30
  %1338 = vmatpush1.msra.mxu0 %v29
  %1339 = vmatprep.subr.mxu0 %v32
  %1340 = vmatpush1.msra.mxu0 %v31
  %1341 = vmatprep.subr.mxu0 0.0
  %1342 = vmatpush1.msra.mxu0 0.0
  %1343 = vmatprep.subr.mxu0 0.0
  %1344 = vmatpush1.msra.mxu0 0.0
  %1345 = vmatprep.subr.mxu0 0.0
  %1346 = vmatpush1.msra.mxu0 0.0
  %1347 = vmatprep.subr.mxu0 0.0
  %1348 = vmatpush1.msra.mxu0 0.0
  %1349 = vmatprep.subr.mxu0 0.0
  %1350 = vmatpush1.msra.mxu0 0.0
  %1351 = vmatprep.subr.mxu0 0.0
  %1352 = vmatpush1.msra.mxu0 0.0
  %1353 = vmatprep.subr.mxu0 0.0
  %1354 = vmatpush1.msra.mxu0 0.0
  %1355 = vmatprep.subr.mxu0 0.0
  %1356 = vmatpush1.msra.mxu0 0.0
  %1357 = vmatprep.subr.mxu0 0.0
  %1358 = vmatpush1.msra.mxu0 0.0
  %1359 = vmatprep.subr.mxu0 0.0
  %1360 = vmatpush1.msra.mxu0 0.0
  %1361 = vmatprep.subr.mxu0 0.0
  %1362 = vmatpush1.msra.mxu0 0.0
  %1363 = vmatprep.subr.mxu0 0.0
  %1364 = vmatpush1.msra.mxu0 0.0
  %1365 = vmatprep.subr.mxu0 0.0
  %1366 = vmatpush1.msra.mxu0 0.0
  %1367 = vmatprep.subr.mxu0 0.0
  %1368 = vmatpush1.msra.mxu0 0.0
  %1369 = vmatprep.subr.mxu0 0.0
  %1370 = vmatpush1.msra.mxu0 0.0
  %1371 = vmatprep.subr.mxu0 0.0
  %1372 = vmatpush1.msra.mxu0 0.0
  %1373 = vmatprep.subr.mxu0 0.0
  %1374 = vmatpush1.msra.mxu0 0.0
  %1375 = vmatprep.subr.mxu0 0.0
  %1376 = vmatpush1.msra.mxu0 0.0
  %1377 = vmatprep.subr.mxu0 0.0
  %1378 = vmatpush1.msra.mxu0 0.0
  %1379 = vmatprep.subr.mxu0 0.0
  %1380 = vmatpush1.msra.mxu0 0.0
  %1381 = vmatprep.subr.mxu0 0.0
  %1382 = vmatpush1.msra.mxu0 0.0
  %1383 = vmatprep.subr.mxu0 0.0
  %1384 = vmatpush1.msra.mxu0 0.0
  %1385 = vmatprep.subr.mxu0 0.0
  %1386 = vmatpush1.msra.mxu0 0.0
  %1387 = vmatprep.subr.mxu0 0.0
  %1388 = vmatpush1.msra.mxu0 0.0
  %1389 = vmatprep.subr.mxu0 0.0
  %1390 = vmatpush1.msra.mxu0 0.0
  %1391 = vmatprep.subr.mxu0 0.0
  %1392 = vmatpush1.msra.mxu0 0.0
  %1393 = vmatprep.subr.mxu0 0.0
  %1394 = vmatpush1.msra.mxu0 0.0
  %1395 = vmatprep.subr.mxu0 0.0
  %1396 = vmatpush1.msra.mxu0 0.0
  %1397 = vmatprep.mubr.f32.mxu0 0.0
  %1398 = vmatmul.mubr.f32.gmra.mrb[0].mxu0 %v1331
  %v1399 = vpop.f32.mrb[0].mxu0
  %v1400 = vadd.f32 0.0, %v1399
  %v1401 = vpop.f32.mrb[0].mxu0
  %v1402 = vadd.f32 0.0, %v1401
  %1403 = vdwg.mxu0
  %v1404 = vadd.f32 %v1402, %v1207
  %1406 = vrot.lane.b32.xlu0 %v1404, 16
  %v1407 = vpop.permute.xlu0 %1406
  %vm1409 = vcmask 255104
  %1410 = vst.msk [vmem:[%s3] sm:$0x3] %vm1409, %v1407
  %v1411 = vsel %vm1209, %v1404, -inf
  %1412 = vmax.xlane.f32.xlu0 %v1411
  %v1413 = vpop.xlane.xlu0 %1412
  %vm1414 = vcmp.eq.f32.partialorder %v1404, %v1413
  %v1415 = vsel %vm1414, %v1023, 16
  %v1416 = vsel %vm1209, %v1415, 2147483647
  %v1417 = vand.u32 %v1416, 65535
  %v1418 = vshra.s32 %v1416, 16
  %v1419 = vcvt.s32.f32 %v1417
  %v1420 = vcvt.s32.f32 %v1418
  %1421 = vmin.xlane.f32.xlu0 %v1420
  %v1422 = vpop.xlane.xlu0 %1421
  %vm1423 = vcmp.eq.f32.partialorder %v1420, %v1422
  %v1424 = vsel %vm1423, %v1419, inf
  %1425 = vmin.xlane.f32.xlu0 %v1424
  %v1426 = vpop.xlane.xlu0 %1425
  %v1427 = vcvt.f32.s32 %v1426
  %v1428 = vcvt.f32.s32 %v1422
  %v1429 = vshll.u32 %v1428, 16
  %v1430 = vadd.s32 %v1429, %v1427
  %vm1431 = vcmp.eq.s32.totalorder %v1023, %v1430
  %v1432 = vsel %vm1431, 1, 0
  %v1433 = vcvt.s32.f32 %v1432
  %v1435 = vsel %vm1234, %v1433, 0
  %1437 = vmatprep.subr.mxu0 0.0
  %1438 = vmatpush1.msra.mxu0 %v203
  %1439 = vmatprep.subr.mxu0 0.0
  %1440 = vmatpush1.msra.mxu0 %v208
  %1441 = vmatprep.subr.mxu0 0.0
  %1442 = vmatpush1.msra.mxu0 0.0
  %1443 = vmatprep.subr.mxu0 0.0
  %1444 = vmatpush1.msra.mxu0 0.0
  %1445 = vmatprep.subr.mxu0 0.0
  %1446 = vmatpush1.msra.mxu0 0.0
  %1447 = vmatprep.subr.mxu0 0.0
  %1448 = vmatpush1.msra.mxu0 0.0
  %1449 = vmatprep.subr.mxu0 0.0
  %1450 = vmatpush1.msra.mxu0 0.0
  %1451 = vmatprep.subr.mxu0 0.0
  %1452 = vmatpush1.msra.mxu0 0.0
  %1453 = vmatprep.subr.mxu0 0.0
  %1454 = vmatpush1.msra.mxu0 0.0
  %1455 = vmatprep.subr.mxu0 0.0
  %1456 = vmatpush1.msra.mxu0 0.0
  %1457 = vmatprep.subr.mxu0 0.0
  %1458 = vmatpush1.msra.mxu0 0.0
  %1459 = vmatprep.subr.mxu0 0.0
  %1460 = vmatpush1.msra.mxu0 0.0
  %1461 = vmatprep.subr.mxu0 0.0
  %1462 = vmatpush1.msra.mxu0 0.0
  %1463 = vmatprep.subr.mxu0 0.0
  %1464 = vmatpush1.msra.mxu0 0.0
  %1465 = vmatprep.subr.mxu0 0.0
  %1466 = vmatpush1.msra.mxu0 0.0
  %1467 = vmatprep.subr.mxu0 0.0
  %1468 = vmatpush1.msra.mxu0 0.0
  %1469 = vmatprep.subr.mxu0 0.0
  %1470 = vmatpush1.msra.mxu0 0.0
  %1471 = vmatprep.subr.mxu0 0.0
  %1472 = vmatpush1.msra.mxu0 0.0
  %1473 = vmatprep.subr.mxu0 0.0
  %1474 = vmatpush1.msra.mxu0 0.0
  %1475 = vmatprep.subr.mxu0 0.0
  %1476 = vmatpush1.msra.mxu0 0.0
  %1477 = vmatprep.subr.mxu0 0.0
  %1478 = vmatpush1.msra.mxu0 0.0
  %1479 = vmatprep.subr.mxu0 0.0
  %1480 = vmatpush1.msra.mxu0 0.0
  %1481 = vmatprep.subr.mxu0 0.0
  %1482 = vmatpush1.msra.mxu0 0.0
  %1483 = vmatprep.subr.mxu0 0.0
  %1484 = vmatpush1.msra.mxu0 0.0
  %1485 = vmatprep.subr.mxu0 0.0
  %1486 = vmatpush1.msra.mxu0 0.0
  %1487 = vmatprep.subr.mxu0 0.0
  %1488 = vmatpush1.msra.mxu0 0.0
  %1489 = vmatprep.subr.mxu0 0.0
  %1490 = vmatpush1.msra.mxu0 0.0
  %1491 = vmatprep.subr.mxu0 0.0
  %1492 = vmatpush1.msra.mxu0 0.0
  %1493 = vmatprep.subr.mxu0 0.0
  %1494 = vmatpush1.msra.mxu0 0.0
  %1495 = vmatprep.subr.mxu0 0.0
  %1496 = vmatpush1.msra.mxu0 0.0
  %1497 = vmatprep.subr.mxu0 0.0
  %1498 = vmatpush1.msra.mxu0 0.0
  %1499 = vmatprep.subr.mxu0 0.0
  %1500 = vmatpush1.msra.mxu0 0.0
  %1501 = vmatprep.mubr.f32.mxu0 0.0
  %1502 = vmatmul.mubr.f32.gmra.mrb[0].mxu0 %v1435
  %v1503 = vpop.f32.mrb[0].mxu0
  %v1504 = vadd.f32 %v1400, %v1503
  %v1505 = vpop.f32.mrb[0].mxu0
  %1506 = vdwg.mxu0
  %v1507 = vtanh.pop %v1504
  %v1508 = vmul.f32 %v1507, 0.5
  %v1509 = vadd.f32 %v1508, 0.5
  %v1510 = vmul.f32 %v1509, %v1321
  %1512 = vrot.lane.b32.xlu0 %v1507, 64
  %v1513 = vpop.permute.xlu0 %1512
  %v1515 = vmul.f32 %v1509, %v1513
  %1517 = vrot.lane.b32.xlu0 %v1515, 32
  %v1518 = vpop.permute.xlu0 %1517
  %v1520 = vadd.f32 %v1510, %v1518
  %v1521 = vtanh.pop %v1520
  %1523 = vrot.lane.b32.xlu0 %v1521, 64
  %v1524 = vpop.permute.xlu0 %1523
  %v1526 = vmul.f32 %v1509, %v1524
  %1528 = vrot.lane.b32.xlu0 %v1526, 32
  %v1529 = vpop.permute.xlu0 %1528
  %v1530 = vsel %vm211, %v1529, 0
  %1532 = vmatprep.subr.mxu0 %v26
  %1533 = vmatpush1.msra.mxu0 %v25
  %1534 = vmatprep.subr.mxu0 %v28
  %1535 = vmatpush1.msra.mxu0 %v27
  %1536 = vmatprep.subr.mxu0 %v30
  %1537 = vmatpush1.msra.mxu0 %v29
  %1538 = vmatprep.subr.mxu0 %v32
  %1539 = vmatpush1.msra.mxu0 %v31
  %1540 = vmatprep.subr.mxu0 0.0
  %1541 = vmatpush1.msra.mxu0 0.0
  %1542 = vmatprep.subr.mxu0 0.0
  %1543 = vmatpush1.msra.mxu0 0.0
  %1544 = vmatprep.subr.mxu0 0.0
  %1545 = vmatpush1.msra.mxu0 0.0
  %1546 = vmatprep.subr.mxu0 0.0
  %1547 = vmatpush1.msra.mxu0 0.0
  %1548 = vmatprep.subr.mxu0 0.0
  %1549 = vmatpush1.msra.mxu0 0.0
  %1550 = vmatprep.subr.mxu0 0.0
  %1551 = vmatpush1.msra.mxu0 0.0
  %1552 = vmatprep.subr.mxu0 0.0
  %1553 = vmatpush1.msra.mxu0 0.0
  %1554 = vmatprep.subr.mxu0 0.0
  %1555 = vmatpush1.msra.mxu0 0.0
  %1556 = vmatprep.subr.mxu0 0.0
  %1557 = vmatpush1.msra.mxu0 0.0
  %1558 = vmatprep.subr.mxu0 0.0
  %1559 = vmatpush1.msra.mxu0 0.0
  %1560 = vmatprep.subr.mxu0 0.0
  %1561 = vmatpush1.msra.mxu0 0.0
  %1562 = vmatprep.subr.mxu0 0.0
  %1563 = vmatpush1.msra.mxu0 0.0
  %1564 = vmatprep.subr.mxu0 0.0
  %1565 = vmatpush1.msra.mxu0 0.0
  %1566 = vmatprep.subr.mxu0 0.0
  %1567 = vmatpush1.msra.mxu0 0.0
  %1568 = vmatprep.subr.mxu0 0.0
  %1569 = vmatpush1.msra.mxu0 0.0
  %1570 = vmatprep.subr.mxu0 0.0
  %1571 = vmatpush1.msra.mxu0 0.0
  %1572 = vmatprep.subr.mxu0 0.0
  %1573 = vmatpush1.msra.mxu0 0.0
  %1574 = vmatprep.subr.mxu0 0.0
  %1575 = vmatpush1.msra.mxu0 0.0
  %1576 = vmatprep.subr.mxu0 0.0
  %1577 = vmatpush1.msra.mxu0 0.0
  %1578 = vmatprep.subr.mxu0 0.0
  %1579 = vmatpush1.msra.mxu0 0.0
  %1580 = vmatprep.subr.mxu0 0.0
  %1581 = vmatpush1.msra.mxu0 0.0
  %1582 = vmatprep.subr.mxu0 0.0
  %1583 = vmatpush1.msra.mxu0 0.0
  %1584 = vmatprep.subr.mxu0 0.0
  %1585 = vmatpush1.msra.mxu0 0.0
  %1586 = vmatprep.subr.mxu0 0.0
  %1587 = vmatpush1.msra.mxu0 0.0
  %1588 = vmatprep.subr.mxu0 0.0
  %1589 = vmatpush1.msra.mxu0 0.0
  %1590 = vmatprep.subr.mxu0 0.0
  %1591 = vmatpush1.msra.mxu0 0.0
  %1592 = vmatprep.subr.mxu0 0.0
  %1593 = vmatpush1.msra.mxu0 0.0
  %1594 = vmatprep.subr.mxu0 0.0
  %1595 = vmatpush1.msra.mxu0 0.0
  %1596 = vmatprep.mubr.f32.mxu0 0.0
  %1597 = vmatmul.mubr.f32.gmra.mrb[0].mxu0 %v1530
  %v1598 = vpop.f32.mrb[0].mxu0
  %v1599 = vadd.f32 0.0, %v1598
  %v1600 = vpop.f32.mrb[0].mxu0
  %v1601 = vadd.f32 0.0, %v1600
  %1602 = vdwg.mxu0
  %v1603 = vadd.f32 %v1601, %v1207
  %1605 = vrot.lane.b32.xlu0 %v1603, 32
  %v1606 = vpop.permute.xlu0 %1605
  %vm1608 = vcmask 386304
  %1609 = vst.msk [vmem:[%s3] sm:$0x3] %vm1608, %v1606
  %v1610 = vsel %vm1209, %v1603, -inf
  %1611 = vmax.xlane.f32.xlu0 %v1610
  %v1612 = vpop.xlane.xlu0 %1611
  %vm1613 = vcmp.eq.f32.partialorder %v1603, %v1612
  %v1614 = vsel %vm1613, %v1023, 16
  %v1615 = vsel %vm1209, %v1614, 2147483647
  %v1616 = vand.u32 %v1615, 65535
  %v1617 = vshra.s32 %v1615, 16
  %v1618 = vcvt.s32.f32 %v1616
  %v1619 = vcvt.s32.f32 %v1617
  %1620 = vmin.xlane.f32.xlu0 %v1619
  %v1621 = vpop.xlane.xlu0 %1620
  %vm1622 = vcmp.eq.f32.partialorder %v1619, %v1621
  %v1623 = vsel %vm1622, %v1618, inf
  %1624 = vmin.xlane.f32.xlu0 %v1623
  %v1625 = vpop.xlane.xlu0 %1624
  %v1626 = vcvt.f32.s32 %v1625
  %v1627 = vcvt.f32.s32 %v1621
  %v1628 = vshll.u32 %v1627, 16
  %v1629 = vadd.s32 %v1628, %v1626
  %vm1630 = vcmp.eq.s32.totalorder %v1023, %v1629
  %v1631 = vsel %vm1630, 1, 0
  %v1632 = vcvt.s32.f32 %v1631
  %v1634 = vsel %vm1234, %v1632, 0
  %1636 = vmatprep.subr.mxu0 0.0
  %1637 = vmatpush1.msra.mxu0 %v203
  %1638 = vmatprep.subr.mxu0 0.0
  %1639 = vmatpush1.msra.mxu0 %v208
  %1640 = vmatprep.subr.mxu0 0.0
  %1641 = vmatpush1.msra.mxu0 0.0
  %1642 = vmatprep.subr.mxu0 0.0
  %1643 = vmatpush1.msra.mxu0 0.0
  %1644 = vmatprep.subr.mxu0 0.0
  %1645 = vmatpush1.msra.mxu0 0.0
  %1646 = vmatprep.subr.mxu0 0.0
  %1647 = vmatpush1.msra.mxu0 0.0
  %1648 = vmatprep.subr.mxu0 0.0
  %1649 = vmatpush1.msra.mxu0 0.0
  %1650 = vmatprep.subr.mxu0 0.0
  %1651 = vmatpush1.msra.mxu0 0.0
  %1652 = vmatprep.subr.mxu0 0.0
  %1653 = vmatpush1.msra.mxu0 0.0
  %1654 = vmatprep.subr.mxu0 0.0
  %1655 = vmatpush1.msra.mxu0 0.0
  %1656 = vmatprep.subr.mxu0 0.0
  %1657 = vmatpush1.msra.mxu0 0.0
  %1658 = vmatprep.subr.mxu0 0.0
  %1659 = vmatpush1.msra.mxu0 0.0
  %1660 = vmatprep.subr.mxu0 0.0
  %1661 = vmatpush1.msra.mxu0 0.0
  %1662 = vmatprep.subr.mxu0 0.0
  %1663 = vmatpush1.msra.mxu0 0.0
  %1664 = vmatprep.subr.mxu0 0.0
  %1665 = vmatpush1.msra.mxu0 0.0
  %1666 = vmatprep.subr.mxu0 0.0
  %1667 = vmatpush1.msra.mxu0 0.0
  %1668 = vmatprep.subr.mxu0 0.0
  %1669 = vmatpush1.msra.mxu0 0.0
  %1670 = vmatprep.subr.mxu0 0.0
  %1671 = vmatpush1.msra.mxu0 0.0
  %1672 = vmatprep.subr.mxu0 0.0
  %1673 = vmatpush1.msra.mxu0 0.0
  %1674 = vmatprep.subr.mxu0 0.0
  %1675 = vmatpush1.msra.mxu0 0.0
  %1676 = vmatprep.subr.mxu0 0.0
  %1677 = vmatpush1.msra.mxu0 0.0
  %1678 = vmatprep.subr.mxu0 0.0
  %1679 = vmatpush1.msra.mxu0 0.0
  %1680 = vmatprep.subr.mxu0 0.0
  %1681 = vmatpush1.msra.mxu0 0.0
  %1682 = vmatprep.subr.mxu0 0.0
  %1683 = vmatpush1.msra.mxu0 0.0
  %1684 = vmatprep.subr.mxu0 0.0
  %1685 = vmatpush1.msra.mxu0 0.0
  %1686 = vmatprep.subr.mxu0 0.0
  %1687 = vmatpush1.msra.mxu0 0.0
  %1688 = vmatprep.subr.mxu0 0.0
  %1689 = vmatpush1.msra.mxu0 0.0
  %1690 = vmatprep.subr.mxu0 0.0
  %1691 = vmatpush1.msra.mxu0 0.0
  %1692 = vmatprep.subr.mxu0 0.0
  %1693 = vmatpush1.msra.mxu0 0.0
  %1694 = vmatprep.subr.mxu0 0.0
  %1695 = vmatpush1.msra.mxu0 0.0
  %1696 = vmatprep.subr.mxu0 0.0
  %1697 = vmatpush1.msra.mxu0 0.0
  %1698 = vmatprep.subr.mxu0 0.0
  %1699 = vmatpush1.msra.mxu0 0.0
  %1700 = vmatprep.mubr.f32.mxu0 0.0
  %1701 = vmatmul.mubr.f32.gmra.mrb[0].mxu0 %v1634
  %v1702 = vpop.f32.mrb[0].mxu0
  %v1703 = vadd.f32 %v1599, %v1702
  %v1704 = vpop.f32.mrb[0].mxu0
  %1705 = vdwg.mxu0
  %v1706 = vtanh.pop %v1703
  %v1707 = vmul.f32 %v1706, 0.5
  %v1708 = vadd.f32 %v1707, 0.5
  %v1709 = vmul.f32 %v1708, %v1520
  %1711 = vrot.lane.b32.xlu0 %v1706, 64
  %v1712 = vpop.permute.xlu0 %1711
  %v1714 = vmul.f32 %v1708, %v1712
  %1716 = vrot.lane.b32.xlu0 %v1714, 32
  %v1717 = vpop.permute.xlu0 %1716
  %v1719 = vadd.f32 %v1709, %v1717
  %v1720 = vtanh.pop %v1719
  %1722 = vrot.lane.b32.xlu0 %v1720, 64
  %v1723 = vpop.permute.xlu0 %1722
  %v1725 = vmul.f32 %v1708, %v1723
  %1727 = vrot.lane.b32.xlu0 %v1725, 32
  %v1728 = vpop.permute.xlu0 %1727
  %v1729 = vsel %vm211, %v1728, 0
  %1731 = vmatprep.subr.mxu0 %v26
  %1732 = vmatpush1.msra.mxu0 %v25
  %1733 = vmatprep.subr.mxu0 %v28
  %1734 = vmatpush1.msra.mxu0 %v27
  %1735 = vmatprep.subr.mxu0 %v30
  %1736 = vmatpush1.msra.mxu0 %v29
  %1737 = vmatprep.subr.mxu0 %v32
  %1738 = vmatpush1.msra.mxu0 %v31
  %1739 = vmatprep.subr.mxu0 0.0
  %1740 = vmatpush1.msra.mxu0 0.0
  %1741 = vmatprep.subr.mxu0 0.0
  %1742 = vmatpush1.msra.mxu0 0.0
  %1743 = vmatprep.subr.mxu0 0.0
  %1744 = vmatpush1.msra.mxu0 0.0
  %1745 = vmatprep.subr.mxu0 0.0
  %1746 = vmatpush1.msra.mxu0 0.0
  %1747 = vmatprep.subr.mxu0 0.0
  %1748 = vmatpush1.msra.mxu0 0.0
  %1749 = vmatprep.subr.mxu0 0.0
  %1750 = vmatpush1.msra.mxu0 0.0
  %1751 = vmatprep.subr.mxu0 0.0
  %1752 = vmatpush1.msra.mxu0 0.0
  %1753 = vmatprep.subr.mxu0 0.0
  %1754 = vmatpush1.msra.mxu0 0.0
  %1755 = vmatprep.subr.mxu0 0.0
  %1756 = vmatpush1.msra.mxu0 0.0
  %1757 = vmatprep.subr.mxu0 0.0
  %1758 = vmatpush1.msra.mxu0 0.0
  %1759 = vmatprep.subr.mxu0 0.0
  %1760 = vmatpush1.msra.mxu0 0.0
  %1761 = vmatprep.subr.mxu0 0.0
  %1762 = vmatpush1.msra.mxu0 0.0
  %1763 = vmatprep.subr.mxu0 0.0
  %1764 = vmatpush1.msra.mxu0 0.0
  %1765 = vmatprep.subr.mxu0 0.0
  %1766 = vmatpush1.msra.mxu0 0.0
  %1767 = vmatprep.subr.mxu0 0.0
  %1768 = vmatpush1.msra.mxu0 0.0
  %1769 = vmatprep.subr.mxu0 0.0
  %1770 = vmatpush1.msra.mxu0 0.0
  %1771 = vmatprep.subr.mxu0 0.0
  %1772 = vmatpush1.msra.mxu0 0.0
  %1773 = vmatprep.subr.mxu0 0.0
  %1774 = vmatpush1.msra.mxu0 0.0
  %1775 = vmatprep.subr.mxu0 0.0
  %1776 = vmatpush1.msra.mxu0 0.0
  %1777 = vmatprep.subr.mxu0 0.0
  %1778 = vmatpush1.msra.mxu0 0.0
  %1779 = vmatprep.subr.mxu0 0.0
  %1780 = vmatpush1.msra.mxu0 0.0
  %1781 = vmatprep.subr.mxu0 0.0
  %1782 = vmatpush1.msra.mxu0 0.0
  %1783 = vmatprep.subr.mxu0 0.0
  %1784 = vmatpush1.msra.mxu0 0.0
  %1785 = vmatprep.subr.mxu0 0.0
  %1786 = vmatpush1.msra.mxu0 0.0
  %1787 = vmatprep.subr.mxu0 0.0
  %1788 = vmatpush1.msra.mxu0 0.0
  %1789 = vmatprep.subr.mxu0 0.0
  %1790 = vmatpush1.msra.mxu0 0.0
  %1791 = vmatprep.subr.mxu0 0.0
  %1792 = vmatpush1.msra.mxu0 0.0
  %1793 = vmatprep.subr.mxu0 0.0
  %1794 = vmatpush1.msra.mxu0 0.0
  %1795 = vmatprep.mubr.f32.mxu0 0.0
  %1796 = vmatmul.mubr.f32.gmra.mrb[0].mxu0 %v1729
  %v1797 = vpop.f32.mrb[0].mxu0
  %v1798 = vadd.f32 0.0, %v1797
  %v1799 = vpop.f32.mrb[0].mxu0
  %v1800 = vadd.f32 0.0, %v1799
  %1801 = vdwg.mxu0
  %v1802 = vadd.f32 %v1800, %v1207
  %1804 = vrot.lane.b32.xlu0 %v1802, 48
  %v1805 = vpop.permute.xlu0 %1804
  %vm1807 = vcmask 517504
  %1808 = vst.msk [vmem:[%s3] sm:$0x3] %vm1807, %v1805
  %v1809 = vsel %vm1209, %v1802, -inf
  %1810 = vmax.xlane.f32.xlu0 %v1809
  %v1811 = vpop.xlane.xlu0 %1810
  %vm1812 = vcmp.eq.f32.partialorder %v1802, %v1811
  %v1813 = vsel %vm1812, %v1023, 16
  %v1814 = vsel %vm1209, %v1813, 2147483647
  %v1815 = vand.u32 %v1814, 65535
  %v1816 = vshra.s32 %v1814, 16
  %v1817 = vcvt.s32.f32 %v1815
  %v1818 = vcvt.s32.f32 %v1816
  %1819 = vmin.xlane.f32.xlu0 %v1818
  %v1820 = vpop.xlane.xlu0 %1819
  %vm1821 = vcmp.eq.f32.partialorder %v1818, %v1820
  %v1822 = vsel %vm1821, %v1817, inf
  %1823 = vmin.xlane.f32.xlu0 %v1822
  %v1824 = vpop.xlane.xlu0 %1823
  %v1825 = vcvt.f32.s32 %v1824
  %v1826 = vcvt.f32.s32 %v1820
  %v1827 = vshll.u32 %v1826, 16
  %v1828 = vadd.s32 %v1827, %v1825
  %vm1829 = vcmp.eq.s32.totalorder %v1023, %v1828
  %v1830 = vsel %vm1829, 1, 0
  %v1831 = vcvt.s32.f32 %v1830
  %v1833 = vsel %vm1234, %v1831, 0
  %1835 = vmatprep.subr.mxu0 0.0
  %1836 = vmatpush1.msra.mxu0 %v203
  %1837 = vmatprep.subr.mxu0 0.0
  %1838 = vmatpush1.msra.mxu0 %v208
  %1839 = vmatprep.subr.mxu0 0.0
  %1840 = vmatpush1.msra.mxu0 0.0
  %1841 = vmatprep.subr.mxu0 0.0
  %1842 = vmatpush1.msra.mxu0 0.0
  %1843 = vmatprep.subr.mxu0 0.0
  %1844 = vmatpush1.msra.mxu0 0.0
  %1845 = vmatprep.subr.mxu0 0.0
  %1846 = vmatpush1.msra.mxu0 0.0
  %1847 = vmatprep.subr.mxu0 0.0
  %1848 = vmatpush1.msra.mxu0 0.0
  %1849 = vmatprep.subr.mxu0 0.0
  %1850 = vmatpush1.msra.mxu0 0.0
  %1851 = vmatprep.subr.mxu0 0.0
  %1852 = vmatpush1.msra.mxu0 0.0
  %1853 = vmatprep.subr.mxu0 0.0
  %1854 = vmatpush1.msra.mxu0 0.0
  %1855 = vmatprep.subr.mxu0 0.0
  %1856 = vmatpush1.msra.mxu0 0.0
  %1857 = vmatprep.subr.mxu0 0.0
  %1858 = vmatpush1.msra.mxu0 0.0
  %1859 = vmatprep.subr.mxu0 0.0
  %1860 = vmatpush1.msra.mxu0 0.0
  %1861 = vmatprep.subr.mxu0 0.0
  %1862 = vmatpush1.msra.mxu0 0.0
  %1863 = vmatprep.subr.mxu0 0.0
  %1864 = vmatpush1.msra.mxu0 0.0
  %1865 = vmatprep.subr.mxu0 0.0
  %1866 = vmatpush1.msra.mxu0 0.0
  %1867 = vmatprep.subr.mxu0 0.0
  %1868 = vmatpush1.msra.mxu0 0.0
  %1869 = vmatprep.subr.mxu0 0.0
  %1870 = vmatpush1.msra.mxu0 0.0
  %1871 = vmatprep.subr.mxu0 0.0
  %1872 = vmatpush1.msra.mxu0 0.0
  %1873 = vmatprep.subr.mxu0 0.0
  %1874 = vmatpush1.msra.mxu0 0.0
  %1875 = vmatprep.subr.mxu0 0.0
  %1876 = vmatpush1.msra.mxu0 0.0
  %1877 = vmatprep.subr.mxu0 0.0
  %1878 = vmatpush1.msra.mxu0 0.0
  %1879 = vmatprep.subr.mxu0 0.0
  %1880 = vmatpush1.msra.mxu0 0.0
  %1881 = vmatprep.subr.mxu0 0.0
  %1882 = vmatpush1.msra.mxu0 0.0
  %1883 = vmatprep.subr.mxu0 0.0
  %1884 = vmatpush1.msra.mxu0 0.0
  %1885 = vmatprep.subr.mxu0 0.0
  %1886 = vmatpush1.msra.mxu0 0.0
  %1887 = vmatprep.subr.mxu0 0.0
  %1888 = vmatpush1.msra.mxu0 0.0
  %1889 = vmatprep.subr.mxu0 0.0
  %1890 = vmatpush1.msra.mxu0 0.0
  %1891 = vmatprep.subr.mxu0 0.0
  %1892 = vmatpush1.msra.mxu0 0.0
  %1893 = vmatprep.subr.mxu0 0.0
  %1894 = vmatpush1.msra.mxu0 0.0
  %1895 = vmatprep.subr.mxu0 0.0
  %1896 = vmatpush1.msra.mxu0 0.0
  %1897 = vmatprep.subr.mxu0 0.0
  %1898 = vmatpush1.msra.mxu0 0.0
  %1899 = vmatprep.mubr.f32.mxu0 0.0
  %1900 = vmatmul.mubr.f32.gmra.mrb[0].mxu0 %v1833
  %v1901 = vpop.f32.mrb[0].mxu0
  %v1902 = vadd.f32 %v1798, %v1901
  %v1903 = vpop.f32.mrb[0].mxu0
  %1904 = vdwg.mxu0
  %v1905 = vtanh.pop %v1902
  %v1906 = vmul.f32 %v1905, 0.5
  %v1907 = vadd.f32 %v1906, 0.5
  %v1908 = vmul.f32 %v1907, %v1719
  %1910 = vrot.lane.b32.xlu0 %v1905, 64
  %v1911 = vpop.permute.xlu0 %1910
  %v1913 = vmul.f32 %v1907, %v1911
  %1915 = vrot.lane.b32.xlu0 %v1913, 32
  %v1916 = vpop.permute.xlu0 %1915
  %v1918 = vadd.f32 %v1908, %v1916
  %v1919 = vtanh.pop %v1918
  %1921 = vrot.lane.b32.xlu0 %v1919, 64
  %v1922 = vpop.permute.xlu0 %1921
  %v1924 = vmul.f32 %v1907, %v1922
  %1926 = vrot.lane.b32.xlu0 %v1924, 32
  %v1927 = vpop.permute.xlu0 %1926
  %v1928 = vsel %vm211, %v1927, 0
  %1930 = vmatprep.subr.mxu0 %v26
  %1931 = vmatpush1.msra.mxu0 %v25
  %1932 = vmatprep.subr.mxu0 %v28
  %1933 = vmatpush1.msra.mxu0 %v27
  %1934 = vmatprep.subr.mxu0 %v30
  %1935 = vmatpush1.msra.mxu0 %v29
  %1936 = vmatprep.subr.mxu0 %v32
  %1937 = vmatpush1.msra.mxu0 %v31
  %1938 = vmatprep.subr.mxu0 0.0
  %1939 = vmatpush1.msra.mxu0 0.0
  %1940 = vmatprep.subr.mxu0 0.0
  %1941 = vmatpush1.msra.mxu0 0.0
  %1942 = vmatprep.subr.mxu0 0.0
  %1943 = vmatpush1.msra.mxu0 0.0
  %1944 = vmatprep.subr.mxu0 0.0
  %1945 = vmatpush1.msra.mxu0 0.0
  %1946 = vmatprep.subr.mxu0 0.0
  %1947 = vmatpush1.msra.mxu0 0.0
  %1948 = vmatprep.subr.mxu0 0.0
  %1949 = vmatpush1.msra.mxu0 0.0
  %1950 = vmatprep.subr.mxu0 0.0
  %1951 = vmatpush1.msra.mxu0 0.0
  %1952 = vmatprep.subr.mxu0 0.0
  %1953 = vmatpush1.msra.mxu0 0.0
  %1954 = vmatprep.subr.mxu0 0.0
  %1955 = vmatpush1.msra.mxu0 0.0
  %1956 = vmatprep.subr.mxu0 0.0
  %1957 = vmatpush1.msra.mxu0 0.0
  %1958 = vmatprep.subr.mxu0 0.0
  %1959 = vmatpush1.msra.mxu0 0.0
  %1960 = vmatprep.subr.mxu0 0.0
  %1961 = vmatpush1.msra.mxu0 0.0
  %1962 = vmatprep.subr.mxu0 0.0
  %1963 = vmatpush1.msra.mxu0 0.0
  %1964 = vmatprep.subr.mxu0 0.0
  %1965 = vmatpush1.msra.mxu0 0.0
  %1966 = vmatprep.subr.mxu0 0.0
  %1967 = vmatpush1.msra.mxu0 0.0
  %1968 = vmatprep.subr.mxu0 0.0
  %1969 = vmatpush1.msra.mxu0 0.0
  %1970 = vmatprep.subr.mxu0 0.0
  %1971 = vmatpush1.msra.mxu0 0.0
  %1972 = vmatprep.subr.mxu0 0.0
  %1973 = vmatpush1.msra.mxu0 0.0
  %1974 = vmatprep.subr.mxu0 0.0
  %1975 = vmatpush1.msra.mxu0 0.0
  %1976 = vmatprep.subr.mxu0 0.0
  %1977 = vmatpush1.msra.mxu0 0.0
  %1978 = vmatprep.subr.mxu0 0.0
  %1979 = vmatpush1.msra.mxu0 0.0
  %1980 = vmatprep.subr.mxu0 0.0
  %1981 = vmatpush1.msra.mxu0 0.0
  %1982 = vmatprep.subr.mxu0 0.0
  %1983 = vmatpush1.msra.mxu0 0.0
  %1984 = vmatprep.subr.mxu0 0.0
  %1985 = vmatpush1.msra.mxu0 0.0
  %1986 = vmatprep.subr.mxu0 0.0
  %1987 = vmatpush1.msra.mxu0 0.0
  %1988 = vmatprep.subr.mxu0 0.0
  %1989 = vmatpush1.msra.mxu0 0.0
  %1990 = vmatprep.subr.mxu0 0.0
  %1991 = vmatpush1.msra.mxu0 0.0
  %1992 = vmatprep.subr.mxu0 0.0
  %1993 = vmatpush1.msra.mxu0 0.0
  %1994 = vmatprep.mubr.f32.mxu0 0.0
  %1995 = vmatmul.mubr.f32.gmra.mrb[0].mxu0 %v1928
  %v1996 = vpop.f32.mrb[0].mxu0
  %v1997 = vadd.f32 0.0, %v1996
  %v1998 = vpop.f32.mrb[0].mxu0
  %v1999 = vadd.f32 0.0, %v1998
  %2000 = vdwg.mxu0
  %v2001 = vadd.f32 %v1999, %v1207
  %2003 = vrot.lane.b32.xlu0 %v2001, 64
  %v2004 = vpop.permute.xlu0 %2003
  %vm2006 = vcmask 648704
  %2007 = vst.msk [vmem:[%s3] sm:$0x3] %vm2006, %v2004
  %v2008 = vsel %vm1209, %v2001, -inf
  %2009 = vmax.xlane.f32.xlu0 %v2008
  %v2010 = vpop.xlane.xlu0 %2009
  %vm2011 = vcmp.eq.f32.partialorder %v2001, %v2010
  %v2012 = vsel %vm2011, %v1023, 16
  %v2013 = vsel %vm1209, %v2012, 2147483647
  %v2014 = vand.u32 %v2013, 65535
  %v2015 = vshra.s32 %v2013, 16
  %v2016 = vcvt.s32.f32 %v2014
  %v2017 = vcvt.s32.f32 %v2015
  %2018 = vmin.xlane.f32.xlu0 %v2017
  %v2019 = vpop.xlane.xlu0 %2018
  %vm2020 = vcmp.eq.f32.partialorder %v2017, %v2019
  %v2021 = vsel %vm2020, %v2016, inf
  %2022 = vmin.xlane.f32.xlu0 %v2021
  %v2023 = vpop.xlane.xlu0 %2022
  %v2024 = vcvt.f32.s32 %v2023
  %v2025 = vcvt.f32.s32 %v2019
  %v2026 = vshll.u32 %v2025, 16
  %v2027 = vadd.s32 %v2026, %v2024
  %vm2028 = vcmp.eq.s32.totalorder %v1023, %v2027
  %v2029 = vsel %vm2028, 1, 0
  %v2030 = vcvt.s32.f32 %v2029
  %v2032 = vsel %vm1234, %v2030, 0
  %2034 = vmatprep.subr.mxu0 0.0
  %2035 = vmatpush1.msra.mxu0 %v203
  %2036 = vmatprep.subr.mxu0 0.0
  %2037 = vmatpush1.msra.mxu0 %v208
  %2038 = vmatprep.subr.mxu0 0.0
  %2039 = vmatpush1.msra.mxu0 0.0
  %2040 = vmatprep.subr.mxu0 0.0
  %2041 = vmatpush1.msra.mxu0 0.0
  %2042 = vmatprep.subr.mxu0 0.0
  %2043 = vmatpush1.msra.mxu0 0.0
  %2044 = vmatprep.subr.mxu0 0.0
  %2045 = vmatpush1.msra.mxu0 0.0
  %2046 = vmatprep.subr.mxu0 0.0
  %2047 = vmatpush1.msra.mxu0 0.0
  %2048 = vmatprep.subr.mxu0 0.0
  %2049 = vmatpush1.msra.mxu0 0.0
  %2050 = vmatprep.subr.mxu0 0.0
  %2051 = vmatpush1.msra.mxu0 0.0
  %2052 = vmatprep.subr.mxu0 0.0
  %2053 = vmatpush1.msra.mxu0 0.0
  %2054 = vmatprep.subr.mxu0 0.0
  %2055 = vmatpush1.msra.mxu0 0.0
  %2056 = vmatprep.subr.mxu0 0.0
  %2057 = vmatpush1.msra.mxu0 0.0
  %2058 = vmatprep.subr.mxu0 0.0
  %2059 = vmatpush1.msra.mxu0 0.0
  %2060 = vmatprep.subr.mxu0 0.0
  %2061 = vmatpush1.msra.mxu0 0.0
  %2062 = vmatprep.subr.mxu0 0.0
  %2063 = vmatpush1.msra.mxu0 0.0
  %2064 = vmatprep.subr.mxu0 0.0
  %2065 = vmatpush1.msra.mxu0 0.0
  %2066 = vmatprep.subr.mxu0 0.0
  %2067 = vmatpush1.msra.mxu0 0.0
  %2068 = vmatprep.subr.mxu0 0.0
  %2069 = vmatpush1.msra.mxu0 0.0
  %2070 = vmatprep.subr.mxu0 0.0
  %2071 = vmatpush1.msra.mxu0 0.0
  %2072 = vmatprep.subr.mxu0 0.0
  %2073 = vmatpush1.msra.mxu0 0.0
  %2074 = vmatprep.subr.mxu0 0.0
  %2075 = vmatpush1.msra.mxu0 0.0
  %2076 = vmatprep.subr.mxu0 0.0
  %2077 = vmatpush1.msra.mxu0 0.0
  %2078 = vmatprep.subr.mxu0 0.0
  %2079 = vmatpush1.msra.mxu0 0.0
  %2080 = vmatprep.subr.mxu0 0.0
  %2081 = vmatpush1.msra.mxu0 0.0
  %2082 = vmatprep.subr.mxu0 0.0
  %2083 = vmatpush1.msra.mxu0 0.0
  %2084 = vmatprep.subr.mxu0 0.0
  %2085 = vmatpush1.msra.mxu0 0.0
  %2086 = vmatprep.subr.mxu0 0.0
  %2087 = vmatpush1.msra.mxu0 0.0
  %2088 = vmatprep.subr.mxu0 0.0
  %2089 = vmatpush1.msra.mxu0 0.0
  %2090 = vmatprep.subr.mxu0 0.0
  %2091 = vmatpush1.msra.mxu0 0.0
  %2092 = vmatprep.subr.mxu0 0.0
  %2093 = vmatpush1.msra.mxu0 0.0
  %2094 = vmatprep.subr.mxu0 0.0
  %2095 = vmatpush1.msra.mxu0 0.0
  %2096 = vmatprep.subr.mxu0 0.0
  %2097 = vmatpush1.msra.mxu0 0.0
  %2098 = vmatprep.mubr.f32.mxu0 0.0
  %2099 = vmatmul.mubr.f32.gmra.mrb[0].mxu0 %v2032
  %v2100 = vpop.f32.mrb[0].mxu0
  %v2101 = vadd.f32 %v1997, %v2100
  %v2102 = vpop.f32.mrb[0].mxu0
  %2103 = vdwg.mxu0
  %v2104 = vtanh.pop %v2101
  %v2105 = vmul.f32 %v2104, 0.5
  %v2106 = vadd.f32 %v2105, 0.5
  %v2107 = vmul.f32 %v2106, %v1918
  %2109 = vrot.lane.b32.xlu0 %v2104, 64
  %v2110 = vpop.permute.xlu0 %2109
  %v2112 = vmul.f32 %v2106, %v2110
  %2114 = vrot.lane.b32.xlu0 %v2112, 32
  %v2115 = vpop.permute.xlu0 %2114
  %v2117 = vadd.f32 %v2107, %v2115
  %v2118 = vtanh.pop %v2117
  %2120 = vrot.lane.b32.xlu0 %v2118, 64
  %v2121 = vpop.permute.xlu0 %2120
  %v2123 = vmul.f32 %v2106, %v2121
  %2125 = vrot.lane.b32.xlu0 %v2123, 32
  %v2126 = vpop.permute.xlu0 %2125
  %v2127 = vsel %vm211, %v2126, 0
  %2129 = vmatprep.subr.mxu0 %v26
  %2130 = vmatpush1.msra.mxu0 %v25
  %2131 = vmatprep.subr.mxu0 %v28
  %2132 = vmatpush1.msra.mxu0 %v27
  %2133 = vmatprep.subr.mxu0 %v30
  %2134 = vmatpush1.msra.mxu0 %v29
  %2135 = vmatprep.subr.mxu0 %v32
  %2136 = vmatpush1.msra.mxu0 %v31
  %2137 = vmatprep.subr.mxu0 0.0
  %2138 = vmatpush1.msra.mxu0 0.0
  %2139 = vmatprep.subr.mxu0 0.0
  %2140 = vmatpush1.msra.mxu0 0.0
  %2141 = vmatprep.subr.mxu0 0.0
  %2142 = vmatpush1.msra.mxu0 0.0
  %2143 = vmatprep.subr.mxu0 0.0
  %2144 = vmatpush1.msra.mxu0 0.0
  %2145 = vmatprep.subr.mxu0 0.0
  %2146 = vmatpush1.msra.mxu0 0.0
  %2147 = vmatprep.subr.mxu0 0.0
  %2148 = vmatpush1.msra.mxu0 0.0
  %2149 = vmatprep.subr.mxu0 0.0
  %2150 = vmatpush1.msra.mxu0 0.0
  %2151 = vmatprep.subr.mxu0 0.0
  %2152 = vmatpush1.msra.mxu0 0.0
  %2153 = vmatprep.subr.mxu0 0.0
  %2154 = vmatpush1.msra.mxu0 0.0
  %2155 = vmatprep.subr.mxu0 0.0
  %2156 = vmatpush1.msra.mxu0 0.0
  %2157 = vmatprep.subr.mxu0 0.0
  %2158 = vmatpush1.msra.mxu0 0.0
  %2159 = vmatprep.subr.mxu0 0.0
  %2160 = vmatpush1.msra.mxu0 0.0
  %2161 = vmatprep.subr.mxu0 0.0
  %2162 = vmatpush1.msra.mxu0 0.0
  %2163 = vmatprep.subr.mxu0 0.0
  %2164 = vmatpush1.msra.mxu0 0.0
  %2165 = vmatprep.subr.mxu0 0.0
  %2166 = vmatpush1.msra.mxu0 0.0
  %2167 = vmatprep.subr.mxu0 0.0
  %2168 = vmatpush1.msra.mxu0 0.0
  %2169 = vmatprep.subr.mxu0 0.0
  %2170 = vmatpush1.msra.mxu0 0.0
  %2171 = vmatprep.subr.mxu0 0.0
  %2172 = vmatpush1.msra.mxu0 0.0
  %2173 = vmatprep.subr.mxu0 0.0
  %2174 = vmatpush1.msra.mxu0 0.0
  %2175 = vmatprep.subr.mxu0 0.0
  %2176 = vmatpush1.msra.mxu0 0.0
  %2177 = vmatprep.subr.mxu0 0.0
  %2178 = vmatpush1.msra.mxu0 0.0
  %2179 = vmatprep.subr.mxu0 0.0
  %2180 = vmatpush1.msra.mxu0 0.0
  %2181 = vmatprep.subr.mxu0 0.0
  %2182 = vmatpush1.msra.mxu0 0.0
  %2183 = vmatprep.subr.mxu0 0.0
  %2184 = vmatpush1.msra.mxu0 0.0
  %2185 = vmatprep.subr.mxu0 0.0
  %2186 = vmatpush1.msra.mxu0 0.0
  %2187 = vmatprep.subr.mxu0 0.0
  %2188 = vmatpush1.msra.mxu0 0.0
  %2189 = vmatprep.subr.mxu0 0.0
  %2190 = vmatpush1.msra.mxu0 0.0
  %2191 = vmatprep.subr.mxu0 0.0
  %2192 = vmatpush1.msra.mxu0 0.0
  %2193 = vmatprep.mubr.f32.mxu0 0.0
  %2194 = vmatmul.mubr.f32.gmra.mrb[0].mxu0 %v2127
  %v2195 = vpop.f32.mrb[0].mxu0
  %v2196 = vpop.f32.mrb[0].mxu0
  %v2197 = vadd.f32 0.0, %v2196
  %2198 = vdwg.mxu0
  %v2199 = vadd.f32 %v2197, %v1207
  %2201 = vrot.lane.b32.xlu0 %v2199, 80
  %v2202 = vpop.permute.xlu0 %2201
  %vm2204 = vcmask 779904
  %2205 = vst.msk [vmem:[%s3] sm:$0x3] %vm2204, %v2202
  // Predicated region
  $region14: #{autoregressive_lstm.1} parent=0 // pred_check
    _
  $region15: #{autoregressive_lstm.1} parent=0 // pred_check_branch
    %2207 = sbr.rel (0) target = $region17
  $region16: #{autoregressive_lstm.1} parent=0 // pred_region
    _
  $region17: #{autoregressive_lstm.1} parent=0 // pred_fallthru
    _
  // Predicated region
  $region18: #{autoregressive_lstm.1} parent=0 // pred_check
    _
  $region19: #{autoregressive_lstm.1} parent=0 // pred_check_branch
    %2209 = sbr.rel (0) target = $region21
  $region20: #{autoregressive_lstm.1} parent=0 // pred_region
    _
  $region21: #{autoregressive_lstm.1} parent=0 // pred_fallthru
    _

</llo_original>
